<compile_context>
chip_gen: v7x
topology: tpu7x:2x2x1
jax: 0.10.0
libtpu: 0.0.40
codegen_flags: <defaults>
</compile_context>

<pallas_src>
import functools

import numpy as np
import jax
import jax.numpy as jnp
from jax.experimental import pallas as pl
from jax.experimental.pallas import tpu as pltpu


# ----------------------------- helpers --------------------------------------


def _layernorm(x, w, eps=1e-5):
    # LayerNorm over the last axis, no bias (matches nn.LayerNorm(..., bias=False))
    mean = jnp.mean(x, axis=-1, keepdims=True)
    var = jnp.mean((x - mean) ** 2, axis=-1, keepdims=True)
    return (x - mean) * jax.lax.rsqrt(var + eps) * w


def rope_tables(theta, T, head_dim):
    """Mel-scaled rotary tables: (T, head_dim//2) cos / sin."""
    n = head_dim // 2
    max_mel = 2595.0 * jnp.log10(jnp.float32(1.0 + 4000.0 / 200.0))
    mel_scale = jnp.power(10.0, jnp.linspace(0.0, max_mel, n) / 2595.0) - 1.0
    freqs = (theta / 220.0) * (200.0 * mel_scale / 1000.0)      # (n,)
    pos = jnp.arange(T, dtype=jnp.float32)
    ang = pos[:, None] * freqs[None, :]                         # (T, n)
    return jnp.cos(ang), jnp.sin(ang)


# ----------------------------- fused kernel ----------------------------------


def attn_kernel(x_ref, lnaw_ref, wqkv_ref, bqkv_ref, rot_ref, mln_ref,
                foldq_ref, foldk_ref, wo_ref, bo_ref, y_ref,
                *, head, head_dim):
    """Per-batch fully-fused attention forward.

    x_ref    : (T, D) f32 input slab for this batch element.
    lnaw     : (1, D) lna weight.
    wqkv     : (D, 3D) bf16 packed [wq_g | wk_g | wv]; q/k columns in the
               global [all-real | all-imag] rotary layout.
    bqkv     : (1, 3D) f32 packed bias (k bias = 0).
    rot      : (T, 2D) f32 packed [cos-tiled | signed-sin-tiled] rope tables.
    mln      : (D, D) bf16 per-head block-averaging matrix (1/hd in-head).
    foldq/k  : (D, D) bf16: lnb scale * (global -> head-grouped) regroup
               permutation; 1/sqrt(hd) attention scale folded into foldq.
    wo, bo   : (D, D) bf16 / (1, D) f32 output projection.
    y_ref    : (T, D) f32 lane-dense output slab (already in (B, T, D) layout).
    """
    D = head * head_dim
    eps = 1e-5

    # ---- LayerNorm(lna) over the model dim (full-lane-width f32 VALU) ------
    x = x_ref[...]
    mu = jnp.mean(x, axis=-1, keepdims=True)
    var = jnp.mean((x - mu) ** 2, axis=-1, keepdims=True)
    xn = (x - mu) * jax.lax.rsqrt(var + eps) * lnaw_ref[...]

    # ---- packed q|k|v projection: bf16 operands, f32 accumulation ----------
    qkv = jnp.dot(xn.astype(jnp.bfloat16), wqkv_ref[...],
                  preferred_element_type=jnp.float32) + bqkv_ref[...]
    q = qkv[:, :D]            # global [real | imag] layout
    k = qkv[:, D:2 * D]       # global [real | imag] layout
    v = qkv[:, 2 * D:]        # natural head-major layout

    # ---- RoPE at full lane width: half-swap is one XLU lane rotation -------
    rot = rot_ref[...]
    cs = rot[:, :D]           # [cos | cos]   tiled over heads
    sg = rot[:, D:]           # [-sin | sin]  tiled over heads
    q = q * cs + pltpu.roll(q, shift=D // 2, axis=1) * sg
    k = k * cs + pltpu.roll(k, shift=D // 2, axis=1) * sg

    # ---- per-head LayerNorm(lnb) at full width ------------------------------
    # Per-head mean / mean-of-squares via one constant block-averaging matmul
    # (MXU is otherwise idle here); lnb scale + attention scale + regroup are
    # folded into a single constant (D, D) matmul.
    def head_layernorm(t, fold_ref):
        m = jnp.dot(t.astype(jnp.bfloat16), mln_ref[...],
                    preferred_element_type=jnp.float32)
        msq = jnp.dot((t * t).astype(jnp.bfloat16), mln_ref[...],
                      preferred_element_type=jnp.float32)
        vv = jnp.maximum(msq - m * m, 0.0)
        normed = (t - m) * jax.lax.rsqrt(vv + eps)
        return jnp.dot(normed.astype(jnp.bfloat16), fold_ref[...],
                       preferred_element_type=jnp.float32)

    qn = head_layernorm(q, foldq_ref)   # (T, D) head-grouped, * 1/sqrt(hd)
    kn = head_layernorm(k, foldk_ref)   # (T, D) head-grouped

    # ---- per-head softmax attention; heads collected into one (T, D) slab --
    outs = []
    for h in range(head):               # head=4: static unroll is fine
        lo = h * head_dim
        qh = qn[:, lo:lo + head_dim].astype(jnp.bfloat16)
        kh = kn[:, lo:lo + head_dim].astype(jnp.bfloat16)
        vh = v[:, lo:lo + head_dim].astype(jnp.bfloat16)

        s = jnp.dot(qh, kh.T, preferred_element_type=jnp.float32)   # (T, T)
        m = jnp.max(s, axis=-1, keepdims=True)
        p = jnp.exp(s - m)
        l = jnp.sum(p, axis=-1, keepdims=True)
        o = jnp.dot(p.astype(jnp.bfloat16), vh,
                    preferred_element_type=jnp.float32)              # (T, hd)
        outs.append(o * pl.reciprocal(l, approx=True))
    o_all = jnp.concatenate(outs, axis=-1)                           # (T, D)

    # ---- single fused output projection (one K=D MXU matmul) ---------------
    y_ref[...] = (jnp.dot(o_all.astype(jnp.bfloat16), wo_ref[...],
                          preferred_element_type=jnp.float32) + bo_ref[...])


# ----------------------------- wrapper --------------------------------------


def attentionb_forward(params, x, *, head):
    B, T, D = x.shape
    hd = D // head
    half = hd // 2

    # ---- trace-time constant packing / permutations (no in-kernel cost) ----
    h_idx = np.arange(head)
    i_idx = np.arange(half)
    # global [all-real | all-imag] column order for q/k projection outputs
    real_cols = (h_idx[:, None] * hd + 2 * i_idx[None, :]).reshape(-1)
    imag_cols = real_cols + 1
    perm_global = np.concatenate([real_cols, imag_cols])            # len D

    wq_g = params["wq"][:, perm_global]
    wk_g = params["wk"][:, perm_global]
    bq_g = params["bq"][perm_global]
    wqkv = jnp.concatenate([wq_g, wk_g, params["wv"]],
                           axis=1).astype(jnp.bfloat16)             # (D, 3D)
    bqkv = jnp.concatenate(
        [bq_g, jnp.zeros((D,), jnp.float32), params["bv"]]          # k: no bias
    ).reshape(1, 3 * D)

    # per-head block-averaging matrix in the global layout
    head_of = np.concatenate([np.repeat(h_idx, half)] * 2)          # len D
    mln = jnp.asarray(
        (head_of[:, None] == head_of[None, :]).astype(np.float32) / hd
    ).astype(jnp.bfloat16)                                          # (D, D)

    # lnb weight per global column + global -> head-grouped regroup fold
    feat_of_global = np.concatenate([np.tile(2 * i_idx, head),
                                     np.tile(2 * i_idx + 1, head)])
    grouped_of_global = np.concatenate([
        (h_idx[:, None] * hd + i_idx[None, :]).reshape(-1),
        (h_idx[:, None] * hd + half + i_idx[None, :]).reshape(-1)])
    regroup = np.zeros((D, D), np.float32)
    regroup[np.arange(D), grouped_of_global] = 1.0
    lnb_g = params["lnb_w"][feat_of_global]                         # (D,)
    foldk = (jnp.asarray(regroup) * lnb_g[:, None]).astype(jnp.bfloat16)
    foldq = (jnp.asarray(regroup)
             * (lnb_g * (1.0 / np.sqrt(hd)))[:, None]).astype(jnp.bfloat16)

    # packed rotary tables, one lane-dense (T, 2D) operand
    cos, sin = rope_tables(params["theta"], T, hd)                  # (T, half)
    cs = jnp.tile(cos, (1, 2 * head))                               # (T, D)
    sg = jnp.concatenate([-jnp.tile(sin, (1, head)),
                          jnp.tile(sin, (1, head))], axis=1)        # (T, D)
    rot = jnp.concatenate([cs, sg], axis=1)                         # (T, 2D)

    wo = params["wo"].astype(jnp.bfloat16)
    bo = params["bo"].reshape(1, D)
    lnaw = params["lna_w"].reshape(1, D)

    kernel = functools.partial(attn_kernel, head=head, head_dim=hd)
    const = lambda b: (0, 0)
    return pl.pallas_call(
        kernel,
        grid=(B,),
        in_specs=[
            pl.BlockSpec((None, T, D), lambda b: (b, 0, 0)),   # x[b]
            pl.BlockSpec((1, D), const),                       # lna weight
            pl.BlockSpec((D, 3 * D), const),                   # packed qkv W
            pl.BlockSpec((1, 3 * D), const),                   # packed qkv b
            pl.BlockSpec((T, 2 * D), const),                   # rope tables
            pl.BlockSpec((D, D), const),                       # head-mean matrix
            pl.BlockSpec((D, D), const),                       # lnb fold (q)
            pl.BlockSpec((D, D), const),                       # lnb fold (k)
            pl.BlockSpec((D, D), const),                       # wo
            pl.BlockSpec((1, D), const),                       # bo
        ],
        out_specs=pl.BlockSpec((None, T, D), lambda b: (b, 0, 0)),
        out_shape=jax.ShapeDtypeStruct((B, T, D), jnp.float32),
        compiler_params=pltpu.CompilerParams(
            dimension_semantics=("parallel",)),
    )(x, lnaw, wqkv, bqkv, rot, mln, foldq, foldk, wo, bo)


def init_params(key, dims, head):
    ks = jax.random.split(key, 9)

    def w(k):
        return jax.random.normal(k, (dims, dims), jnp.float32) * 0.02

    def b(k):
        return jax.random.normal(k, (dims,), jnp.float32) * 0.02

    return dict(
        wq=w(ks[0]), bq=b(ks[1]),
        wk=w(ks[2]),
        wv=w(ks[3]), bv=b(ks[4]),
        wo=w(ks[5]), bo=b(ks[6]),
        lna_w=1.0 + 0.1 * jax.random.normal(ks[7], (dims,), jnp.float32),
        lnb_w=1.0 + 0.1 * jax.random.normal(ks[8], (dims // head,), jnp.float32),
        theta=jnp.float32(10000.0),
    )


# ----------------------------- reference (pure JAX, f32) ---------------------


def reference_forward(params, x, *, head):
    B, T, D = x.shape
    hd = D // head
    xn = _layernorm(x, params["lna_w"])
    q = xn @ params["wq"] + params["bq"]
    k = xn @ params["wk"]
    v = xn @ params["wv"] + params["bv"]

    def split(t):
        return t.reshape(B, T, head, hd).transpose(0, 2, 1, 3)

    q, k, v = split(q), split(k), split(v)
    cos, sin = rope_tables(params["theta"], T, hd)
    cos_full = jnp.repeat(cos, 2, axis=-1)                        # [c0,c0,c1,c1,...]
    sin_signed = jnp.stack([-sin, sin], axis=-1).reshape(T, hd)   # [-s0,s0,-s1,s1,...]

    def rope(t):
        swapped = t.reshape(B, head, T, hd // 2, 2)[..., ::-1].reshape(B, head, T, hd)
        return t * cos_full + swapped * sin_signed

    qn = _layernorm(rope(q), params["lnb_w"])
    kn = _layernorm(rope(k), params["lnb_w"])
    s = jnp.einsum("bhqd,bhkd->bhqk", qn, kn) / jnp.sqrt(jnp.float32(hd))
    p = jax.nn.softmax(s, axis=-1)
    a = jnp.einsum("bhqk,bhkd->bhqd", p, v)
    out = a.transpose(0, 2, 1, 3).reshape(B, T, D)
    return out @ params["wo"] + params["bo"]


# ----------------------------- main ------------------------------------------


if __name__ == "__main__":
    B, T, dims, head = 2, 16, 128, 4
    key = jax.random.PRNGKey(0)
    kx, kp = jax.random.split(key)
    x = jax.random.normal(kx, (B, T, dims), jnp.float32)
    params = init_params(kp, dims, head)

    fwd = jax.jit(functools.partial(attentionb_forward, head=head))
    y = fwd(params, x)
    jax.block_until_ready(y)

    y_ref = reference_forward(params, x, head=head)
    assert y.shape == (B, T, dims)
    assert bool(jnp.all(jnp.isfinite(y)))
    # bf16 MXU operands (f32 accumulation) + approx reciprocal -> small
    # (~1e-3-level) absolute deviation vs the pure-f32 reference at these scales.
    assert bool(jnp.allclose(y, y_ref, atol=8e-3, rtol=8e-3)), "mismatch vs reference"

    print("KERNEL_OK")
</pallas_src>

<mosaic_0001>
module attributes {stable_mosaic.version = 11 : i64} {
  func.func @attn_kernel(%arg0: i32, %arg1: memref<1x16x128xf32, #tpu.memory_space<vmem>>, %arg2: memref<1x128xf32, #tpu.memory_space<vmem>>, %arg3: memref<128x384xbf16, #tpu.memory_space<vmem>>, %arg4: memref<1x384xf32, #tpu.memory_space<vmem>>, %arg5: memref<16x256xf32, #tpu.memory_space<vmem>>, %arg6: memref<128x128xbf16, #tpu.memory_space<vmem>>, %arg7: memref<128x128xbf16, #tpu.memory_space<vmem>>, %arg8: memref<128x128xbf16, #tpu.memory_space<vmem>>, %arg9: memref<128x128xbf16, #tpu.memory_space<vmem>>, %arg10: memref<1x128xf32, #tpu.memory_space<vmem>>, %arg11: memref<1x16x128xf32, #tpu.memory_space<vmem>>) attributes {dimension_semantics = [#tpu.dimension_semantics<parallel>], iteration_bounds = array<i64: 2>, scalar_prefetch = 0 : i64, scratch_operands = 0 : i64, tpu.core_type = #tpu.core_type<tc>, window_params = [{transform_indices = @transform_0, window_bounds = array<i64: 1, 16, 128>}, {pipeline_mode = #tpu.pipeline_mode<synchronous>, transform_indices = @transform_1, window_bounds = array<i64: 1, 128>}, {pipeline_mode = #tpu.pipeline_mode<synchronous>, transform_indices = @transform_2, window_bounds = array<i64: 128, 384>}, {pipeline_mode = #tpu.pipeline_mode<synchronous>, transform_indices = @transform_3, window_bounds = array<i64: 1, 384>}, {pipeline_mode = #tpu.pipeline_mode<synchronous>, transform_indices = @transform_4, window_bounds = array<i64: 16, 256>}, {pipeline_mode = #tpu.pipeline_mode<synchronous>, transform_indices = @transform_5, window_bounds = array<i64: 128, 128>}, {pipeline_mode = #tpu.pipeline_mode<synchronous>, transform_indices = @transform_6, window_bounds = array<i64: 128, 128>}, {pipeline_mode = #tpu.pipeline_mode<synchronous>, transform_indices = @transform_7, window_bounds = array<i64: 128, 128>}, {pipeline_mode = #tpu.pipeline_mode<synchronous>, transform_indices = @transform_8, window_bounds = array<i64: 128, 128>}, {pipeline_mode = #tpu.pipeline_mode<synchronous>, transform_indices = @transform_9, window_bounds = array<i64: 1, 128>}, {transform_indices = @transform_10, window_bounds = array<i64: 1, 16, 128>}]} {
    %c0 = arith.constant 0 : index
    %c0_0 = arith.constant 0 : index
    %c0_1 = arith.constant 0 : index
    %0 = vector.load %arg1[%c0, %c0_0, %c0_1] : memref<1x16x128xf32, #tpu.memory_space<vmem>>, vector<1x16x128xf32>
    %1 = vector.shape_cast %0 : vector<1x16x128xf32> to vector<16x128xf32>
    %cst = arith.constant dense<0.000000e+00> : vector<16xf32>
    %2 = vector.multi_reduction <add>, %1, %cst [1] : vector<16x128xf32> to vector<16xf32>
    %3 = vector.shape_cast %2 : vector<16xf32> to vector<16x1xf32>
    %cst_2 = arith.constant 1.280000e+02 : f32
    %4 = vector.broadcast %cst_2 : f32 to vector<16x1xf32>
    %5 = arith.divf %3, %4 : vector<16x1xf32>
    %6 = vector.broadcast %5 : vector<16x1xf32> to vector<16x128xf32>
    %7 = arith.subf %1, %6 : vector<16x128xf32>
    %8 = arith.mulf %7, %7 : vector<16x128xf32>
    %cst_3 = arith.constant dense<0.000000e+00> : vector<16xf32>
    %9 = vector.multi_reduction <add>, %8, %cst_3 [1] : vector<16x128xf32> to vector<16xf32>
    %10 = vector.shape_cast %9 : vector<16xf32> to vector<16x1xf32>
    %cst_4 = arith.constant 1.280000e+02 : f32
    %11 = vector.broadcast %cst_4 : f32 to vector<16x1xf32>
    %12 = arith.divf %10, %11 : vector<16x1xf32>
    %13 = vector.broadcast %5 : vector<16x1xf32> to vector<16x128xf32>
    %14 = arith.subf %1, %13 : vector<16x128xf32>
    %cst_5 = arith.constant 9.99999974E-6 : f32
    %15 = vector.broadcast %cst_5 : f32 to vector<16x1xf32>
    %16 = arith.addf %12, %15 : vector<16x1xf32>
    %17 = math.rsqrt %16 : vector<16x1xf32>
    %18 = vector.broadcast %17 : vector<16x1xf32> to vector<16x128xf32>
    %19 = arith.mulf %14, %18 : vector<16x128xf32>
    %c0_6 = arith.constant 0 : index
    %c0_7 = arith.constant 0 : index
    %20 = vector.load %arg2[%c0_6, %c0_7] : memref<1x128xf32, #tpu.memory_space<vmem>>, vector<1x128xf32>
    %21 = vector.broadcast %20 : vector<1x128xf32> to vector<16x128xf32>
    %22 = arith.mulf %19, %21 : vector<16x128xf32>
    %23 = arith.truncf %22 : vector<16x128xf32> to vector<16x128xbf16>
    %c0_8 = arith.constant 0 : index
    %c0_9 = arith.constant 0 : index
    %24 = vector.load %arg3[%c0_8, %c0_9] : memref<128x384xbf16, #tpu.memory_space<vmem>>, vector<128x384xbf16>
    %cst_10 = arith.constant dense<0.000000e+00> : vector<16x384xf32>
    %25 = tpu.matmul %23, %24, %cst_10 {dimension_numbers = #tpu.dot_dimension_numbers<[1], [0], [0], [1], [0, 0, 1, 1], [], []>} : vector<16x128xbf16>, vector<128x384xbf16>, vector<16x384xf32> -> vector<16x384xf32>
    %c0_11 = arith.constant 0 : index
    %c0_12 = arith.constant 0 : index
    %26 = vector.load %arg4[%c0_11, %c0_12] : memref<1x384xf32, #tpu.memory_space<vmem>>, vector<1x384xf32>
    %27 = vector.broadcast %26 : vector<1x384xf32> to vector<16x384xf32>
    %28 = arith.addf %25, %27 : vector<16x384xf32>
    %29 = vector.extract_strided_slice %28 {offsets = [0, 0], sizes = [16, 128], strides = [1, 1]} : vector<16x384xf32> to vector<16x128xf32>
    %30 = vector.extract_strided_slice %28 {offsets = [0, 128], sizes = [16, 128], strides = [1, 1]} : vector<16x384xf32> to vector<16x128xf32>
    %31 = vector.extract_strided_slice %28 {offsets = [0, 256], sizes = [16, 128], strides = [1, 1]} : vector<16x384xf32> to vector<16x128xf32>
    %c0_13 = arith.constant 0 : index
    %c0_14 = arith.constant 0 : index
    %32 = vector.load %arg5[%c0_13, %c0_14] : memref<16x256xf32, #tpu.memory_space<vmem>>, vector<16x256xf32>
    %33 = vector.extract_strided_slice %32 {offsets = [0, 0], sizes = [16, 128], strides = [1, 1]} : vector<16x256xf32> to vector<16x128xf32>
    %34 = vector.extract_strided_slice %32 {offsets = [0, 128], sizes = [16, 128], strides = [1, 1]} : vector<16x256xf32> to vector<16x128xf32>
    %35 = arith.mulf %29, %33 : vector<16x128xf32>
    %c64_i32 = arith.constant 64 : i32
    %36 = tpu.dynamic_rotate %29 by %c64_i32 dim 1 : vector<16x128xf32>, i32 -> vector<16x128xf32>
    %37 = arith.mulf %36, %34 : vector<16x128xf32>
    %38 = arith.addf %35, %37 : vector<16x128xf32>
    %39 = arith.mulf %30, %33 : vector<16x128xf32>
    %c64_i32_15 = arith.constant 64 : i32
    %40 = tpu.dynamic_rotate %30 by %c64_i32_15 dim 1 : vector<16x128xf32>, i32 -> vector<16x128xf32>
    %41 = arith.mulf %40, %34 : vector<16x128xf32>
    %42 = arith.addf %39, %41 : vector<16x128xf32>
    %43 = arith.truncf %38 : vector<16x128xf32> to vector<16x128xbf16>
    %c0_16 = arith.constant 0 : index
    %c0_17 = arith.constant 0 : index
    %44 = vector.load %arg6[%c0_16, %c0_17] : memref<128x128xbf16, #tpu.memory_space<vmem>>, vector<128x128xbf16>
    %cst_18 = arith.constant dense<0.000000e+00> : vector<16x128xf32>
    %45 = tpu.matmul %43, %44, %cst_18 {dimension_numbers = #tpu.dot_dimension_numbers<[1], [0], [0], [1], [0, 0, 1, 1], [], []>} : vector<16x128xbf16>, vector<128x128xbf16>, vector<16x128xf32> -> vector<16x128xf32>
    %46 = arith.mulf %38, %38 : vector<16x128xf32>
    %47 = arith.truncf %46 : vector<16x128xf32> to vector<16x128xbf16>
    %c0_19 = arith.constant 0 : index
    %c0_20 = arith.constant 0 : index
    %48 = vector.load %arg6[%c0_19, %c0_20] : memref<128x128xbf16, #tpu.memory_space<vmem>>, vector<128x128xbf16>
    %cst_21 = arith.constant dense<0.000000e+00> : vector<16x128xf32>
    %49 = tpu.matmul %47, %48, %cst_21 {dimension_numbers = #tpu.dot_dimension_numbers<[1], [0], [0], [1], [0, 0, 1, 1], [], []>} : vector<16x128xbf16>, vector<128x128xbf16>, vector<16x128xf32> -> vector<16x128xf32>
    %50 = arith.mulf %45, %45 : vector<16x128xf32>
    %51 = arith.subf %49, %50 : vector<16x128xf32>
    %cst_22 = arith.constant 0.000000e+00 : f32
    %52 = vector.broadcast %cst_22 : f32 to vector<16x128xf32>
    %53 = arith.maximumf %51, %52 : vector<16x128xf32>
    %54 = arith.subf %38, %45 : vector<16x128xf32>
    %cst_23 = arith.constant 9.99999974E-6 : f32
    %55 = vector.broadcast %cst_23 : f32 to vector<16x128xf32>
    %56 = arith.addf %53, %55 : vector<16x128xf32>
    %57 = math.rsqrt %56 : vector<16x128xf32>
    %58 = arith.mulf %54, %57 : vector<16x128xf32>
    %59 = arith.truncf %58 : vector<16x128xf32> to vector<16x128xbf16>
    %c0_24 = arith.constant 0 : index
    %c0_25 = arith.constant 0 : index
    %60 = vector.load %arg7[%c0_24, %c0_25] : memref<128x128xbf16, #tpu.memory_space<vmem>>, vector<128x128xbf16>
    %cst_26 = arith.constant dense<0.000000e+00> : vector<16x128xf32>
    %61 = tpu.matmul %59, %60, %cst_26 {dimension_numbers = #tpu.dot_dimension_numbers<[1], [0], [0], [1], [0, 0, 1, 1], [], []>} : vector<16x128xbf16>, vector<128x128xbf16>, vector<16x128xf32> -> vector<16x128xf32>
    %62 = arith.truncf %42 : vector<16x128xf32> to vector<16x128xbf16>
    %c0_27 = arith.constant 0 : index
    %c0_28 = arith.constant 0 : index
    %63 = vector.load %arg6[%c0_27, %c0_28] : memref<128x128xbf16, #tpu.memory_space<vmem>>, vector<128x128xbf16>
    %cst_29 = arith.constant dense<0.000000e+00> : vector<16x128xf32>
    %64 = tpu.matmul %62, %63, %cst_29 {dimension_numbers = #tpu.dot_dimension_numbers<[1], [0], [0], [1], [0, 0, 1, 1], [], []>} : vector<16x128xbf16>, vector<128x128xbf16>, vector<16x128xf32> -> vector<16x128xf32>
    %65 = arith.mulf %42, %42 : vector<16x128xf32>
    %66 = arith.truncf %65 : vector<16x128xf32> to vector<16x128xbf16>
    %c0_30 = arith.constant 0 : index
    %c0_31 = arith.constant 0 : index
    %67 = vector.load %arg6[%c0_30, %c0_31] : memref<128x128xbf16, #tpu.memory_space<vmem>>, vector<128x128xbf16>
    %cst_32 = arith.constant dense<0.000000e+00> : vector<16x128xf32>
    %68 = tpu.matmul %66, %67, %cst_32 {dimension_numbers = #tpu.dot_dimension_numbers<[1], [0], [0], [1], [0, 0, 1, 1], [], []>} : vector<16x128xbf16>, vector<128x128xbf16>, vector<16x128xf32> -> vector<16x128xf32>
    %69 = arith.mulf %64, %64 : vector<16x128xf32>
    %70 = arith.subf %68, %69 : vector<16x128xf32>
    %cst_33 = arith.constant 0.000000e+00 : f32
    %71 = vector.broadcast %cst_33 : f32 to vector<16x128xf32>
    %72 = arith.maximumf %70, %71 : vector<16x128xf32>
    %73 = arith.subf %42, %64 : vector<16x128xf32>
    %cst_34 = arith.constant 9.99999974E-6 : f32
    %74 = vector.broadcast %cst_34 : f32 to vector<16x128xf32>
    %75 = arith.addf %72, %74 : vector<16x128xf32>
    %76 = math.rsqrt %75 : vector<16x128xf32>
    %77 = arith.mulf %73, %76 : vector<16x128xf32>
    %78 = arith.truncf %77 : vector<16x128xf32> to vector<16x128xbf16>
    %c0_35 = arith.constant 0 : index
    %c0_36 = arith.constant 0 : index
    %79 = vector.load %arg8[%c0_35, %c0_36] : memref<128x128xbf16, #tpu.memory_space<vmem>>, vector<128x128xbf16>
    %cst_37 = arith.constant dense<0.000000e+00> : vector<16x128xf32>
    %80 = tpu.matmul %78, %79, %cst_37 {dimension_numbers = #tpu.dot_dimension_numbers<[1], [0], [0], [1], [0, 0, 1, 1], [], []>} : vector<16x128xbf16>, vector<128x128xbf16>, vector<16x128xf32> -> vector<16x128xf32>
    %81 = vector.extract_strided_slice %61 {offsets = [0, 0], sizes = [16, 32], strides = [1, 1]} : vector<16x128xf32> to vector<16x32xf32>
    %82 = arith.truncf %81 : vector<16x32xf32> to vector<16x32xbf16>
    %83 = vector.extract_strided_slice %80 {offsets = [0, 0], sizes = [16, 32], strides = [1, 1]} : vector<16x128xf32> to vector<16x32xf32>
    %84 = arith.truncf %83 : vector<16x32xf32> to vector<16x32xbf16>
    %85 = vector.extract_strided_slice %31 {offsets = [0, 0], sizes = [16, 32], strides = [1, 1]} : vector<16x128xf32> to vector<16x32xf32>
    %86 = arith.truncf %85 : vector<16x32xf32> to vector<16x32xbf16>
    %87 = tpu.transpose %84, [1, 0] : vector<16x32xbf16> -> vector<32x16xbf16>
    %cst_38 = arith.constant dense<0.000000e+00> : vector<16x16xf32>
    %88 = tpu.matmul %82, %87, %cst_38 {dimension_numbers = #tpu.dot_dimension_numbers<[1], [0], [0], [1], [0, 0, 1, 1], [], []>} : vector<16x32xbf16>, vector<32x16xbf16>, vector<16x16xf32> -> vector<16x16xf32>
    %cst_39 = arith.constant dense<0xFF800000> : vector<16xf32>
    %89 = vector.multi_reduction <maximumf>, %88, %cst_39 [1] : vector<16x16xf32> to vector<16xf32>
    %90 = vector.shape_cast %89 : vector<16xf32> to vector<16x1xf32>
    %91 = vector.broadcast %90 : vector<16x1xf32> to vector<16x16xf32>
    %92 = arith.subf %88, %91 : vector<16x16xf32>
    %93 = math.exp %92 : vector<16x16xf32>
    %cst_40 = arith.constant dense<0.000000e+00> : vector<16xf32>
    %94 = vector.multi_reduction <add>, %93, %cst_40 [1] : vector<16x16xf32> to vector<16xf32>
    %95 = vector.shape_cast %94 : vector<16xf32> to vector<16x1xf32>
    %96 = arith.truncf %93 : vector<16x16xf32> to vector<16x16xbf16>
    %cst_41 = arith.constant dense<0.000000e+00> : vector<16x32xf32>
    %97 = tpu.matmul %96, %86, %cst_41 {dimension_numbers = #tpu.dot_dimension_numbers<[1], [0], [0], [1], [0, 0, 1, 1], [], []>} : vector<16x16xbf16>, vector<16x32xbf16>, vector<16x32xf32> -> vector<16x32xf32>
    %98 = tpu.reciprocal %95 {approx = true} : vector<16x1xf32> -> vector<16x1xf32>
    %99 = vector.broadcast %98 : vector<16x1xf32> to vector<16x32xf32>
    %100 = arith.mulf %97, %99 : vector<16x32xf32>
    %101 = vector.extract_strided_slice %61 {offsets = [0, 32], sizes = [16, 32], strides = [1, 1]} : vector<16x128xf32> to vector<16x32xf32>
    %102 = arith.truncf %101 : vector<16x32xf32> to vector<16x32xbf16>
    %103 = vector.extract_strided_slice %80 {offsets = [0, 32], sizes = [16, 32], strides = [1, 1]} : vector<16x128xf32> to vector<16x32xf32>
    %104 = arith.truncf %103 : vector<16x32xf32> to vector<16x32xbf16>
    %105 = vector.extract_strided_slice %31 {offsets = [0, 32], sizes = [16, 32], strides = [1, 1]} : vector<16x128xf32> to vector<16x32xf32>
    %106 = arith.truncf %105 : vector<16x32xf32> to vector<16x32xbf16>
    %107 = tpu.transpose %104, [1, 0] : vector<16x32xbf16> -> vector<32x16xbf16>
    %cst_42 = arith.constant dense<0.000000e+00> : vector<16x16xf32>
    %108 = tpu.matmul %102, %107, %cst_42 {dimension_numbers = #tpu.dot_dimension_numbers<[1], [0], [0], [1], [0, 0, 1, 1], [], []>} : vector<16x32xbf16>, vector<32x16xbf16>, vector<16x16xf32> -> vector<16x16xf32>
    %cst_43 = arith.constant dense<0xFF800000> : vector<16xf32>
    %109 = vector.multi_reduction <maximumf>, %108, %cst_43 [1] : vector<16x16xf32> to vector<16xf32>
    %110 = vector.shape_cast %109 : vector<16xf32> to vector<16x1xf32>
    %111 = vector.broadcast %110 : vector<16x1xf32> to vector<16x16xf32>
    %112 = arith.subf %108, %111 : vector<16x16xf32>
    %113 = math.exp %112 : vector<16x16xf32>
    %cst_44 = arith.constant dense<0.000000e+00> : vector<16xf32>
    %114 = vector.multi_reduction <add>, %113, %cst_44 [1] : vector<16x16xf32> to vector<16xf32>
    %115 = vector.shape_cast %114 : vector<16xf32> to vector<16x1xf32>
    %116 = arith.truncf %113 : vector<16x16xf32> to vector<16x16xbf16>
    %cst_45 = arith.constant dense<0.000000e+00> : vector<16x32xf32>
    %117 = tpu.matmul %116, %106, %cst_45 {dimension_numbers = #tpu.dot_dimension_numbers<[1], [0], [0], [1], [0, 0, 1, 1], [], []>} : vector<16x16xbf16>, vector<16x32xbf16>, vector<16x32xf32> -> vector<16x32xf32>
    %118 = tpu.reciprocal %115 {approx = true} : vector<16x1xf32> -> vector<16x1xf32>
    %119 = vector.broadcast %118 : vector<16x1xf32> to vector<16x32xf32>
    %120 = arith.mulf %117, %119 : vector<16x32xf32>
    %121 = vector.extract_strided_slice %61 {offsets = [0, 64], sizes = [16, 32], strides = [1, 1]} : vector<16x128xf32> to vector<16x32xf32>
    %122 = arith.truncf %121 : vector<16x32xf32> to vector<16x32xbf16>
    %123 = vector.extract_strided_slice %80 {offsets = [0, 64], sizes = [16, 32], strides = [1, 1]} : vector<16x128xf32> to vector<16x32xf32>
    %124 = arith.truncf %123 : vector<16x32xf32> to vector<16x32xbf16>
    %125 = vector.extract_strided_slice %31 {offsets = [0, 64], sizes = [16, 32], strides = [1, 1]} : vector<16x128xf32> to vector<16x32xf32>
    %126 = arith.truncf %125 : vector<16x32xf32> to vector<16x32xbf16>
    %127 = tpu.transpose %124, [1, 0] : vector<16x32xbf16> -> vector<32x16xbf16>
    %cst_46 = arith.constant dense<0.000000e+00> : vector<16x16xf32>
    %128 = tpu.matmul %122, %127, %cst_46 {dimension_numbers = #tpu.dot_dimension_numbers<[1], [0], [0], [1], [0, 0, 1, 1], [], []>} : vector<16x32xbf16>, vector<32x16xbf16>, vector<16x16xf32> -> vector<16x16xf32>
    %cst_47 = arith.constant dense<0xFF800000> : vector<16xf32>
    %129 = vector.multi_reduction <maximumf>, %128, %cst_47 [1] : vector<16x16xf32> to vector<16xf32>
    %130 = vector.shape_cast %129 : vector<16xf32> to vector<16x1xf32>
    %131 = vector.broadcast %130 : vector<16x1xf32> to vector<16x16xf32>
    %132 = arith.subf %128, %131 : vector<16x16xf32>
    %133 = math.exp %132 : vector<16x16xf32>
    %cst_48 = arith.constant dense<0.000000e+00> : vector<16xf32>
    %134 = vector.multi_reduction <add>, %133, %cst_48 [1] : vector<16x16xf32> to vector<16xf32>
    %135 = vector.shape_cast %134 : vector<16xf32> to vector<16x1xf32>
    %136 = arith.truncf %133 : vector<16x16xf32> to vector<16x16xbf16>
    %cst_49 = arith.constant dense<0.000000e+00> : vector<16x32xf32>
    %137 = tpu.matmul %136, %126, %cst_49 {dimension_numbers = #tpu.dot_dimension_numbers<[1], [0], [0], [1], [0, 0, 1, 1], [], []>} : vector<16x16xbf16>, vector<16x32xbf16>, vector<16x32xf32> -> vector<16x32xf32>
    %138 = tpu.reciprocal %135 {approx = true} : vector<16x1xf32> -> vector<16x1xf32>
    %139 = vector.broadcast %138 : vector<16x1xf32> to vector<16x32xf32>
    %140 = arith.mulf %137, %139 : vector<16x32xf32>
    %141 = vector.extract_strided_slice %61 {offsets = [0, 96], sizes = [16, 32], strides = [1, 1]} : vector<16x128xf32> to vector<16x32xf32>
    %142 = arith.truncf %141 : vector<16x32xf32> to vector<16x32xbf16>
    %143 = vector.extract_strided_slice %80 {offsets = [0, 96], sizes = [16, 32], strides = [1, 1]} : vector<16x128xf32> to vector<16x32xf32>
    %144 = arith.truncf %143 : vector<16x32xf32> to vector<16x32xbf16>
    %145 = vector.extract_strided_slice %31 {offsets = [0, 96], sizes = [16, 32], strides = [1, 1]} : vector<16x128xf32> to vector<16x32xf32>
    %146 = arith.truncf %145 : vector<16x32xf32> to vector<16x32xbf16>
    %147 = tpu.transpose %144, [1, 0] : vector<16x32xbf16> -> vector<32x16xbf16>
    %cst_50 = arith.constant dense<0.000000e+00> : vector<16x16xf32>
    %148 = tpu.matmul %142, %147, %cst_50 {dimension_numbers = #tpu.dot_dimension_numbers<[1], [0], [0], [1], [0, 0, 1, 1], [], []>} : vector<16x32xbf16>, vector<32x16xbf16>, vector<16x16xf32> -> vector<16x16xf32>
    %cst_51 = arith.constant dense<0xFF800000> : vector<16xf32>
    %149 = vector.multi_reduction <maximumf>, %148, %cst_51 [1] : vector<16x16xf32> to vector<16xf32>
    %150 = vector.shape_cast %149 : vector<16xf32> to vector<16x1xf32>
    %151 = vector.broadcast %150 : vector<16x1xf32> to vector<16x16xf32>
    %152 = arith.subf %148, %151 : vector<16x16xf32>
    %153 = math.exp %152 : vector<16x16xf32>
    %cst_52 = arith.constant dense<0.000000e+00> : vector<16xf32>
    %154 = vector.multi_reduction <add>, %153, %cst_52 [1] : vector<16x16xf32> to vector<16xf32>
    %155 = vector.shape_cast %154 : vector<16xf32> to vector<16x1xf32>
    %156 = arith.truncf %153 : vector<16x16xf32> to vector<16x16xbf16>
    %cst_53 = arith.constant dense<0.000000e+00> : vector<16x32xf32>
    %157 = tpu.matmul %156, %146, %cst_53 {dimension_numbers = #tpu.dot_dimension_numbers<[1], [0], [0], [1], [0, 0, 1, 1], [], []>} : vector<16x16xbf16>, vector<16x32xbf16>, vector<16x32xf32> -> vector<16x32xf32>
    %158 = tpu.reciprocal %155 {approx = true} : vector<16x1xf32> -> vector<16x1xf32>
    %159 = vector.broadcast %158 : vector<16x1xf32> to vector<16x32xf32>
    %160 = arith.mulf %157, %159 : vector<16x32xf32>
    %161 = tpu.concatenate %100, %120, %140, %160 in 1 : vector<16x32xf32>, vector<16x32xf32>, vector<16x32xf32>, vector<16x32xf32> -> vector<16x128xf32>
    %162 = arith.truncf %161 : vector<16x128xf32> to vector<16x128xbf16>
    %c0_54 = arith.constant 0 : index
    %c0_55 = arith.constant 0 : index
    %163 = vector.load %arg9[%c0_54, %c0_55] : memref<128x128xbf16, #tpu.memory_space<vmem>>, vector<128x128xbf16>
    %cst_56 = arith.constant dense<0.000000e+00> : vector<16x128xf32>
    %164 = tpu.matmul %162, %163, %cst_56 {dimension_numbers = #tpu.dot_dimension_numbers<[1], [0], [0], [1], [0, 0, 1, 1], [], []>} : vector<16x128xbf16>, vector<128x128xbf16>, vector<16x128xf32> -> vector<16x128xf32>
    %c0_57 = arith.constant 0 : index
    %c0_58 = arith.constant 0 : index
    %165 = vector.load %arg10[%c0_57, %c0_58] : memref<1x128xf32, #tpu.memory_space<vmem>>, vector<1x128xf32>
    %166 = vector.broadcast %165 : vector<1x128xf32> to vector<16x128xf32>
    %167 = arith.addf %164, %166 : vector<16x128xf32>
    %c0_59 = arith.constant 0 : index
    %c0_60 = arith.constant 0 : index
    %c0_61 = arith.constant 0 : index
    %168 = vector.load %arg11[%c0_59, %c0_60, %c0_61] : memref<1x16x128xf32, #tpu.memory_space<vmem>>, vector<1x16x128xf32>
    %169 = vector.shape_cast %168 : vector<1x16x128xf32> to vector<16x128xf32>
    %170 = vector.shape_cast %167 : vector<16x128xf32> to vector<1x16x128xf32>
    tpu.vector_store %arg11[%c0_59, %c0_60, %c0_61], %170 {strides = array<i32>} : memref<1x16x128xf32, #tpu.memory_space<vmem>>, vector<1x16x128xf32>,
    return
  }
  func.func @transform_0(%arg0: i32) -> (i32, i32, i32) {
    %c0_i32 = arith.constant 0 : i32
    %c0_i32_0 = arith.constant 0 : i32
    %c0_i32_1 = arith.constant 0 : i32
    return %arg0, %c0_i32, %c0_i32_0 : i32, i32, i32
  }
  func.func @transform_1(%arg0: i32) -> (i32, i32) {
    %c0_i32 = arith.constant 0 : i32
    %c0_i32_0 = arith.constant 0 : i32
    %c0_i32_1 = arith.constant 0 : i32
    return %c0_i32, %c0_i32_0 : i32, i32
  }
  func.func @transform_2(%arg0: i32) -> (i32, i32) {
    %c0_i32 = arith.constant 0 : i32
    %c0_i32_0 = arith.constant 0 : i32
    %c0_i32_1 = arith.constant 0 : i32
    return %c0_i32, %c0_i32_0 : i32, i32
  }
  func.func @transform_3(%arg0: i32) -> (i32, i32) {
    %c0_i32 = arith.constant 0 : i32
    %c0_i32_0 = arith.constant 0 : i32
    %c0_i32_1 = arith.constant 0 : i32
    return %c0_i32, %c0_i32_0 : i32, i32
  }
  func.func @transform_4(%arg0: i32) -> (i32, i32) {
    %c0_i32 = arith.constant 0 : i32
    %c0_i32_0 = arith.constant 0 : i32
    %c0_i32_1 = arith.constant 0 : i32
    return %c0_i32, %c0_i32_0 : i32, i32
  }
  func.func @transform_5(%arg0: i32) -> (i32, i32) {
    %c0_i32 = arith.constant 0 : i32
    %c0_i32_0 = arith.constant 0 : i32
    %c0_i32_1 = arith.constant 0 : i32
    return %c0_i32, %c0_i32_0 : i32, i32
  }
  func.func @transform_6(%arg0: i32) -> (i32, i32) {
    %c0_i32 = arith.constant 0 : i32
    %c0_i32_0 = arith.constant 0 : i32
    %c0_i32_1 = arith.constant 0 : i32
    return %c0_i32, %c0_i32_0 : i32, i32
  }
  func.func @transform_7(%arg0: i32) -> (i32, i32) {
    %c0_i32 = arith.constant 0 : i32
    %c0_i32_0 = arith.constant 0 : i32
    %c0_i32_1 = arith.constant 0 : i32
    return %c0_i32, %c0_i32_0 : i32, i32
  }
  func.func @transform_8(%arg0: i32) -> (i32, i32) {
    %c0_i32 = arith.constant 0 : i32
    %c0_i32_0 = arith.constant 0 : i32
    %c0_i32_1 = arith.constant 0 : i32
    return %c0_i32, %c0_i32_0 : i32, i32
  }
  func.func @transform_9(%arg0: i32) -> (i32, i32) {
    %c0_i32 = arith.constant 0 : i32
    %c0_i32_0 = arith.constant 0 : i32
    %c0_i32_1 = arith.constant 0 : i32
    return %c0_i32, %c0_i32_0 : i32, i32
  }
  func.func @transform_10(%arg0: i32) -> (i32, i32, i32) {
    %c0_i32 = arith.constant 0 : i32
    %c0_i32_0 = arith.constant 0 : i32
    %c0_i32_1 = arith.constant 0 : i32
    return %arg0, %c0_i32, %c0_i32_0 : i32, i32, i32
  }
}

</mosaic_0001>

<llo_original>
// kernel: neg.1
$region0: #{neg.1}
  #allocation0 [shape = 's32[1]{0}', space=sflag, size = 0x4, scoped, tag = 'scoped memory for neg.1']
  %s0 = inlined_call_operand.vmem [shape: f32[16,64], index: 0, kind: input, shape index: {}]
  %s1 = inlined_call_operand.vmem [shape: f32[16,64], index: 1, kind: output, shape index: {}]
  %v2 = vld [vmem:[%s0] sm:$0xff]
  %3 = xla_tuple %v2
  %4 = xla_tuple %3
  %v5 = vxor.u32 %v2, 2147483648
  %6 = xla_tuple %v5
  %7 = vst [vmem:[%s1] sm:$0xff] %v5
  %s8 = scalar_lea.vmem %s0, 8
  %v9 = vld [vmem:[%s8] sm:$0xff]
  %10 = xla_tuple %v9
  %11 = xla_tuple %10
  %v12 = vxor.u32 %v9, 2147483648
  %13 = xla_tuple %v12
  %s14 = scalar_lea.vmem %s1, 8
  %15 = vst [vmem:[%s14] sm:$0xff] %v12

// kernel: tile.24
$region0: #{tile.24}
  %s0 = inlined_call_operand.vmem [shape: f32[16,4,16], index: 0, kind: input, shape index: {}]
  %s1 = inlined_call_operand.vmem [shape: f32[16,64], index: 1, kind: output, shape index: {}]
  $region1: #{tile.24} parent=0
    #allocation0 [shape = 'u8[65536]{0}', space=vmem, size = 0x10000, scoped, tag = 'scoped mem for input reshape']
    %s3 = sshllo.u32 0, 4
    %s4 = smul.addr 4, 15
    %s5 = scalar_lea.vmem %s0, %s4
    %v6 = vld [vmem:[%s5] sm:%s3]
    %s7 = scalar_lea.vmem [#allocation0], 120
    %8 = vst [vmem:[%s7] sm:%s3] %v6
    %s9 = smul.addr 4, 14
    %s10 = scalar_lea.vmem %s0, %s9
    %v11 = vld [vmem:[%s10] sm:%s3]
    %s12 = scalar_lea.vmem [#allocation0], 112
    %13 = vst [vmem:[%s12] sm:%s3] %v11
    %s14 = smul.addr 4, 13
    %s15 = scalar_lea.vmem %s0, %s14
    %v16 = vld [vmem:[%s15] sm:%s3]
    %s17 = scalar_lea.vmem [#allocation0], 104
    %18 = vst [vmem:[%s17] sm:%s3] %v16
    %s19 = smul.addr 4, 12
    %s20 = scalar_lea.vmem %s0, %s19
    %v21 = vld [vmem:[%s20] sm:%s3]
    %s22 = scalar_lea.vmem [#allocation0], 96
    %23 = vst [vmem:[%s22] sm:%s3] %v21
    %s24 = smul.addr 4, 11
    %s25 = scalar_lea.vmem %s0, %s24
    %v26 = vld [vmem:[%s25] sm:%s3]
    %s27 = scalar_lea.vmem [#allocation0], 88
    %28 = vst [vmem:[%s27] sm:%s3] %v26
    %s29 = smul.addr 4, 10
    %s30 = scalar_lea.vmem %s0, %s29
    %v31 = vld [vmem:[%s30] sm:%s3]
    %s32 = scalar_lea.vmem [#allocation0], 80
    %33 = vst [vmem:[%s32] sm:%s3] %v31
    %s34 = smul.addr 4, 9
    %s35 = scalar_lea.vmem %s0, %s34
    %v36 = vld [vmem:[%s35] sm:%s3]
    %s37 = scalar_lea.vmem [#allocation0], 72
    %38 = vst [vmem:[%s37] sm:%s3] %v36
    %s39 = smul.addr 4, 8
    %s40 = scalar_lea.vmem %s0, %s39
    %v41 = vld [vmem:[%s40] sm:%s3]
    %s42 = scalar_lea.vmem [#allocation0], 64
    %43 = vst [vmem:[%s42] sm:%s3] %v41
    %s44 = smul.addr 4, 7
    %s45 = scalar_lea.vmem %s0, %s44
    %v46 = vld [vmem:[%s45] sm:%s3]
    %s47 = scalar_lea.vmem [#allocation0], 56
    %48 = vst [vmem:[%s47] sm:%s3] %v46
    %s49 = smul.addr 4, 6
    %s50 = scalar_lea.vmem %s0, %s49
    %v51 = vld [vmem:[%s50] sm:%s3]
    %s52 = scalar_lea.vmem [#allocation0], 48
    %53 = vst [vmem:[%s52] sm:%s3] %v51
    %s54 = smul.addr 4, 5
    %s55 = scalar_lea.vmem %s0, %s54
    %v56 = vld [vmem:[%s55] sm:%s3]
    %s57 = scalar_lea.vmem [#allocation0], 40
    %58 = vst [vmem:[%s57] sm:%s3] %v56
    %s59 = smul.addr 4, 4
    %s60 = scalar_lea.vmem %s0, %s59
    %v61 = vld [vmem:[%s60] sm:%s3]
    %s62 = scalar_lea.vmem [#allocation0], 32
    %63 = vst [vmem:[%s62] sm:%s3] %v61
    %s64 = smul.addr 4, 3
    %s65 = scalar_lea.vmem %s0, %s64
    %v66 = vld [vmem:[%s65] sm:%s3]
    %s67 = scalar_lea.vmem [#allocation0], 24
    %68 = vst [vmem:[%s67] sm:%s3] %v66
    %s69 = smul.addr 4, 2
    %s70 = scalar_lea.vmem %s0, %s69
    %v71 = vld [vmem:[%s70] sm:%s3]
    %s72 = scalar_lea.vmem [#allocation0], 16
    %73 = vst [vmem:[%s72] sm:%s3] %v71
    %s74 = scalar_lea.vmem %s0, 4
    %v75 = vld [vmem:[%s74] sm:%s3]
    %s76 = scalar_lea.vmem [#allocation0], 8
    %77 = vst [vmem:[%s76] sm:%s3] %v75
    %v78 = vld [vmem:[%s0] sm:%s3]
    %79 = vst [vmem:[#allocation0] sm:%s3] %v78
    %v80 = vld [vmem:[#allocation0] ss:$8 sm:$0xf]
    %v81 = vld [vmem:[#allocation0] ss:$8 sm:$0xf0]
    %vm82 = vcmask 1047556
    %v83 = vsel %vm82, %v81, %v80
    %vm84 = vcmask 130048
    %85 = vst.msk [vmem:[%s1] sm:$0xff] %vm84, %v83
    %s86 = scalar_lea.vmem [#allocation0], 64
    %v87 = vld [vmem:[%s86] ss:$8 sm:$0xf]
    %s88 = scalar_lea.vmem [#allocation0], 64
    %v89 = vld [vmem:[%s88] ss:$8 sm:$0xf0]
    %vm90 = vcmask 1047556
    %v91 = vsel %vm90, %v89, %v87
    %vm92 = vcmask 130048
    %s93 = scalar_lea.vmem %s1, 8
    %94 = vst.msk [vmem:[%s93] sm:$0xff] %vm92, %v91
    %s95 = scalar_lea.vmem [#allocation0], 3
    %v96 = vld [vmem:[%s95] ss:$8 sm:$0xf]
    %s97 = scalar_lea.vmem [#allocation0], 3
    %v98 = vld [vmem:[%s97] ss:$8 sm:$0xf0]
    %vm99 = vcmask 1047556
    %v100 = vsel %vm99, %v98, %v96
    %101 = vrot.lane.b32.xlu0 %v100, 48
    %v102 = vpop.permute.xlu0 %101
    %vm103 = vcmask 523648
    %104 = vst.msk [vmem:[%s1] sm:$0xff] %vm103, %v102
    %s105 = scalar_lea.vmem [#allocation0], 67
    %v106 = vld [vmem:[%s105] ss:$8 sm:$0xf]
    %s107 = scalar_lea.vmem [#allocation0], 67
    %v108 = vld [vmem:[%s107] ss:$8 sm:$0xf0]
    %vm109 = vcmask 1047556
    %v110 = vsel %vm109, %v108, %v106
    %111 = vrot.lane.b32.xlu0 %v110, 48
    %v112 = vpop.permute.xlu0 %111
    %vm113 = vcmask 523648
    %s114 = scalar_lea.vmem %s1, 8
    %115 = vst.msk [vmem:[%s114] sm:$0xff] %vm113, %v112
    %s116 = scalar_lea.vmem [#allocation0], 2
    %v117 = vld [vmem:[%s116] ss:$8 sm:$0xf]
    %s118 = scalar_lea.vmem [#allocation0], 2
    %v119 = vld [vmem:[%s118] ss:$8 sm:$0xf0]
    %vm120 = vcmask 1047556
    %v121 = vsel %vm120, %v119, %v117
    %122 = vrot.lane.b32.xlu0 %v121, 32
    %v123 = vpop.permute.xlu0 %122
    %vm124 = vcmask 392448
    %125 = vst.msk [vmem:[%s1] sm:$0xff] %vm124, %v123
    %s126 = scalar_lea.vmem [#allocation0], 66
    %v127 = vld [vmem:[%s126] ss:$8 sm:$0xf]
    %s128 = scalar_lea.vmem [#allocation0], 66
    %v129 = vld [vmem:[%s128] ss:$8 sm:$0xf0]
    %vm130 = vcmask 1047556
    %v131 = vsel %vm130, %v129, %v127
    %132 = vrot.lane.b32.xlu0 %v131, 32
    %v133 = vpop.permute.xlu0 %132
    %vm134 = vcmask 392448
    %s135 = scalar_lea.vmem %s1, 8
    %136 = vst.msk [vmem:[%s135] sm:$0xff] %vm134, %v133
    %s137 = scalar_lea.vmem [#allocation0], 1
    %v138 = vld [vmem:[%s137] ss:$8 sm:$0xf]
    %s139 = scalar_lea.vmem [#allocation0], 1
    %v140 = vld [vmem:[%s139] ss:$8 sm:$0xf0]
    %vm141 = vcmask 1047556
    %v142 = vsel %vm141, %v140, %v138
    %143 = vrot.lane.b32.xlu0 %v142, 16
    %v144 = vpop.permute.xlu0 %143
    %vm145 = vcmask 261248
    %146 = vst.msk [vmem:[%s1] sm:$0xff] %vm145, %v144
    %s147 = scalar_lea.vmem [#allocation0], 65
    %v148 = vld [vmem:[%s147] ss:$8 sm:$0xf]
    %s149 = scalar_lea.vmem [#allocation0], 65
    %v150 = vld [vmem:[%s149] ss:$8 sm:$0xf0]
    %vm151 = vcmask 1047556
    %v152 = vsel %vm151, %v150, %v148
    %153 = vrot.lane.b32.xlu0 %v152, 16
    %v154 = vpop.permute.xlu0 %153
    %vm155 = vcmask 261248
    %s156 = scalar_lea.vmem %s1, 8
    %157 = vst.msk [vmem:[%s156] sm:$0xff] %vm155, %v154

// kernel: tile.19
$region0: #{tile.19}
  %s0 = inlined_call_operand.vmem [shape: f32[16,8,16], index: 0, kind: input, shape index: {}]
  %s1 = inlined_call_operand.vmem [shape: f32[16,128], index: 1, kind: output, shape index: {}]
  %v2 = vld [vmem:[%s0] ss:$8 sm:$0xf]
  %v3 = vld [vmem:[%s0] ss:$8 sm:$0xf0]
  %vm4 = vcmask 1047556
  %v5 = vsel %vm4, %v3, %v2
  %vm6 = vcmask 130048
  %7 = vst.msk [vmem:[%s1] sm:$0xff] %vm6, %v5
  %s8 = scalar_lea.vmem %s0, 64
  %v9 = vld [vmem:[%s8] ss:$8 sm:$0xf]
  %s10 = scalar_lea.vmem %s0, 64
  %v11 = vld [vmem:[%s10] ss:$8 sm:$0xf0]
  %vm12 = vcmask 1047556
  %v13 = vsel %vm12, %v11, %v9
  %vm14 = vcmask 130048
  %s15 = scalar_lea.vmem %s1, 8
  %16 = vst.msk [vmem:[%s15] sm:$0xff] %vm14, %v13
  %s17 = scalar_lea.vmem %s0, 7
  %v18 = vld [vmem:[%s17] ss:$8 sm:$0xf]
  %s19 = scalar_lea.vmem %s0, 7
  %v20 = vld [vmem:[%s19] ss:$8 sm:$0xf0]
  %vm21 = vcmask 1047556
  %v22 = vsel %vm21, %v20, %v18
  %23 = vrot.lane.b32.xlu0 %v22, 112
  %v24 = vpop.permute.xlu0 %23
  %vm25 = vcmask 1048448
  %26 = vst.msk [vmem:[%s1] sm:$0xff] %vm25, %v24
  %s27 = scalar_lea.vmem %s0, 71
  %v28 = vld [vmem:[%s27] ss:$8 sm:$0xf]
  %s29 = scalar_lea.vmem %s0, 71
  %v30 = vld [vmem:[%s29] ss:$8 sm:$0xf0]
  %vm31 = vcmask 1047556
  %v32 = vsel %vm31, %v30, %v28
  %33 = vrot.lane.b32.xlu0 %v32, 112
  %v34 = vpop.permute.xlu0 %33
  %vm35 = vcmask 1048448
  %s36 = scalar_lea.vmem %s1, 8
  %37 = vst.msk [vmem:[%s36] sm:$0xff] %vm35, %v34
  %s38 = scalar_lea.vmem %s0, 6
  %v39 = vld [vmem:[%s38] ss:$8 sm:$0xf]
  %s40 = scalar_lea.vmem %s0, 6
  %v41 = vld [vmem:[%s40] ss:$8 sm:$0xf0]
  %vm42 = vcmask 1047556
  %v43 = vsel %vm42, %v41, %v39
  %44 = vrot.lane.b32.xlu0 %v43, 96
  %v45 = vpop.permute.xlu0 %44
  %vm46 = vcmask 917248
  %47 = vst.msk [vmem:[%s1] sm:$0xff] %vm46, %v45
  %s48 = scalar_lea.vmem %s0, 70
  %v49 = vld [vmem:[%s48] ss:$8 sm:$0xf]
  %s50 = scalar_lea.vmem %s0, 70
  %v51 = vld [vmem:[%s50] ss:$8 sm:$0xf0]
  %vm52 = vcmask 1047556
  %v53 = vsel %vm52, %v51, %v49
  %54 = vrot.lane.b32.xlu0 %v53, 96
  %v55 = vpop.permute.xlu0 %54
  %vm56 = vcmask 917248
  %s57 = scalar_lea.vmem %s1, 8
  %58 = vst.msk [vmem:[%s57] sm:$0xff] %vm56, %v55
  %s59 = scalar_lea.vmem %s0, 5
  %v60 = vld [vmem:[%s59] ss:$8 sm:$0xf]
  %s61 = scalar_lea.vmem %s0, 5
  %v62 = vld [vmem:[%s61] ss:$8 sm:$0xf0]
  %vm63 = vcmask 1047556
  %v64 = vsel %vm63, %v62, %v60
  %65 = vrot.lane.b32.xlu0 %v64, 80
  %v66 = vpop.permute.xlu0 %65
  %vm67 = vcmask 786048
  %68 = vst.msk [vmem:[%s1] sm:$0xff] %vm67, %v66
  %s69 = scalar_lea.vmem %s0, 69
  %v70 = vld [vmem:[%s69] ss:$8 sm:$0xf]
  %s71 = scalar_lea.vmem %s0, 69
  %v72 = vld [vmem:[%s71] ss:$8 sm:$0xf0]
  %vm73 = vcmask 1047556
  %v74 = vsel %vm73, %v72, %v70
  %75 = vrot.lane.b32.xlu0 %v74, 80
  %v76 = vpop.permute.xlu0 %75
  %vm77 = vcmask 786048
  %s78 = scalar_lea.vmem %s1, 8
  %79 = vst.msk [vmem:[%s78] sm:$0xff] %vm77, %v76
  %s80 = scalar_lea.vmem %s0, 4
  %v81 = vld [vmem:[%s80] ss:$8 sm:$0xf]
  %s82 = scalar_lea.vmem %s0, 4
  %v83 = vld [vmem:[%s82] ss:$8 sm:$0xf0]
  %vm84 = vcmask 1047556
  %v85 = vsel %vm84, %v83, %v81
  %86 = vrot.lane.b32.xlu0 %v85, 64
  %v87 = vpop.permute.xlu0 %86
  %vm88 = vcmask 654848
  %89 = vst.msk [vmem:[%s1] sm:$0xff] %vm88, %v87
  %s90 = scalar_lea.vmem %s0, 68
  %v91 = vld [vmem:[%s90] ss:$8 sm:$0xf]
  %s92 = scalar_lea.vmem %s0, 68
  %v93 = vld [vmem:[%s92] ss:$8 sm:$0xf0]
  %vm94 = vcmask 1047556
  %v95 = vsel %vm94, %v93, %v91
  %96 = vrot.lane.b32.xlu0 %v95, 64
  %v97 = vpop.permute.xlu0 %96
  %vm98 = vcmask 654848
  %s99 = scalar_lea.vmem %s1, 8
  %100 = vst.msk [vmem:[%s99] sm:$0xff] %vm98, %v97
  %s101 = scalar_lea.vmem %s0, 3
  %v102 = vld [vmem:[%s101] ss:$8 sm:$0xf]
  %s103 = scalar_lea.vmem %s0, 3
  %v104 = vld [vmem:[%s103] ss:$8 sm:$0xf0]
  %vm105 = vcmask 1047556
  %v106 = vsel %vm105, %v104, %v102
  %107 = vrot.lane.b32.xlu0 %v106, 48
  %v108 = vpop.permute.xlu0 %107
  %vm109 = vcmask 523648
  %110 = vst.msk [vmem:[%s1] sm:$0xff] %vm109, %v108
  %s111 = scalar_lea.vmem %s0, 67
  %v112 = vld [vmem:[%s111] ss:$8 sm:$0xf]
  %s113 = scalar_lea.vmem %s0, 67
  %v114 = vld [vmem:[%s113] ss:$8 sm:$0xf0]
  %vm115 = vcmask 1047556
  %v116 = vsel %vm115, %v114, %v112
  %117 = vrot.lane.b32.xlu0 %v116, 48
  %v118 = vpop.permute.xlu0 %117
  %vm119 = vcmask 523648
  %s120 = scalar_lea.vmem %s1, 8
  %121 = vst.msk [vmem:[%s120] sm:$0xff] %vm119, %v118
  %s122 = scalar_lea.vmem %s0, 2
  %v123 = vld [vmem:[%s122] ss:$8 sm:$0xf]
  %s124 = scalar_lea.vmem %s0, 2
  %v125 = vld [vmem:[%s124] ss:$8 sm:$0xf0]
  %vm126 = vcmask 1047556
  %v127 = vsel %vm126, %v125, %v123
  %128 = vrot.lane.b32.xlu0 %v127, 32
  %v129 = vpop.permute.xlu0 %128
  %vm130 = vcmask 392448
  %131 = vst.msk [vmem:[%s1] sm:$0xff] %vm130, %v129
  %s132 = scalar_lea.vmem %s0, 66
  %v133 = vld [vmem:[%s132] ss:$8 sm:$0xf]
  %s134 = scalar_lea.vmem %s0, 66
  %v135 = vld [vmem:[%s134] ss:$8 sm:$0xf0]
  %vm136 = vcmask 1047556
  %v137 = vsel %vm136, %v135, %v133
  %138 = vrot.lane.b32.xlu0 %v137, 32
  %v139 = vpop.permute.xlu0 %138
  %vm140 = vcmask 392448
  %s141 = scalar_lea.vmem %s1, 8
  %142 = vst.msk [vmem:[%s141] sm:$0xff] %vm140, %v139
  %s143 = scalar_lea.vmem %s0, 1
  %v144 = vld [vmem:[%s143] ss:$8 sm:$0xf]
  %s145 = scalar_lea.vmem %s0, 1
  %v146 = vld [vmem:[%s145] ss:$8 sm:$0xf0]
  %vm147 = vcmask 1047556
  %v148 = vsel %vm147, %v146, %v144
  %149 = vrot.lane.b32.xlu0 %v148, 16
  %v150 = vpop.permute.xlu0 %149
  %vm151 = vcmask 261248
  %152 = vst.msk [vmem:[%s1] sm:$0xff] %vm151, %v150
  %s153 = scalar_lea.vmem %s0, 65
  %v154 = vld [vmem:[%s153] ss:$8 sm:$0xf]
  %s155 = scalar_lea.vmem %s0, 65
  %v156 = vld [vmem:[%s155] ss:$8 sm:$0xf0]
  %vm157 = vcmask 1047556
  %v158 = vsel %vm157, %v156, %v154
  %159 = vrot.lane.b32.xlu0 %v158, 16
  %v160 = vpop.permute.xlu0 %159
  %vm161 = vcmask 261248
  %s162 = scalar_lea.vmem %s1, 8
  %163 = vst.msk [vmem:[%s162] sm:$0xff] %vm161, %v160

// kernel: attentionb_forward.1
$region0: #{attentionb_forward.1}
  #allocation0 [shape = 'u32[]', space=smem, size = 0x4, offset = 0x4, fixed_abs, tag = 'smem constant byte address 0x4 - core index']
  #allocation1 [shape = 'u32[144,128]{1,0:T(1,128)}', space=vmem, size = 0x12000, scoped, tag = 'internal scratch']
  %s0 = inlined_call_operand.vmem [shape: f32[2,16,128], index: 0, kind: input, shape index: {}]
  %s1 = inlined_call_operand.vmem [shape: f32[1,128], index: 1, kind: input, shape index: {}]
  %s2 = inlined_call_operand.vmem [shape: bf16[128,384], index: 2, kind: input, shape index: {}]
  %s3 = inlined_call_operand.vmem [shape: f32[1,384], index: 3, kind: input, shape index: {}]
  %s4 = inlined_call_operand.vmem [shape: f32[16,256], index: 4, kind: input, shape index: {}]
  %s5 = inlined_call_operand.vmem [shape: bf16[128,128], index: 5, kind: input, shape index: {}]
  %s6 = inlined_call_operand.vmem [shape: bf16[128,128], index: 6, kind: input, shape index: {}]
  %s7 = inlined_call_operand.vmem [shape: bf16[128,128], index: 7, kind: input, shape index: {}]
  %s8 = inlined_call_operand.vmem [shape: bf16[128,128], index: 8, kind: input, shape index: {}]
  %s9 = inlined_call_operand.vmem [shape: f32[1,128], index: 9, kind: input, shape index: {}]
  %s10 = inlined_call_operand.hbm [shape: f32[2,16,128], index: 10, kind: output, shape index: {}]
  %s11 = sld [smem:[#allocation0]]
  $region73: #{attentionb_forward.1} parent=0
    _
  %s13 = ssub.s32 1, %s11
  %s14 = scalar_select 0, %s13, %s11
  $region1: #{attentionb_forward.1} parent=0
    #allocation2 [shape = 'u8[16384]{0}', space=vmem, size = 0x4000, scoped, tag = 'output window, operand 0']
    #allocation3 [shape = 's32[2]{0}', space=sflag, size = 0x8, scoped, tag = 'scoped memory for attentionb_forward.1']
    %15 = vsyncpa [#allocation3], 0
    %s16 = scalar_lea.sflag [#allocation3], 1
    %17 = vsyncpa %s16, 0
    loop: start=0, step=1, limit=4
    $region2: #{attentionb_forward.1} parent=1 // loop_pre_header
      _
    $region3: #{attentionb_forward.1} parent=1 // loop_header
      %s19 = sphi 0, %s23
      %p20 = scmp.ge.s32.totalorder %s19, 4
      %s29 = sphi 0, %s31
      %s32 = sphi 0, %s29
      %s33 = sphi 0, %s32
      %s49 = sphi 0, %s33
      %s53 = sphi 0, %s53
      %s55 = sphi 0, %s53
      %s56 = sphi 0, %s55
      %s70 = sphi 0, %s56
      %s74 = sphi 0, %s74
      %s76 = sphi 0, %s74
      %s77 = sphi 0, %s76
      %s91 = sphi 0, %s77
      %s95 = sphi 0, %s95
      %s97 = sphi 0, %s95
      %s98 = sphi 0, %s97
      %s112 = sphi 0, %s98
      %s116 = sphi 0, %s116
      %s118 = sphi 0, %s116
      %s119 = sphi 0, %s118
      %s133 = sphi 0, %s119
      %s137 = sphi 0, %s137
      %s139 = sphi 0, %s137
      %s140 = sphi 0, %s139
      %s154 = sphi 0, %s140
      %s158 = sphi 0, %s158
      %s160 = sphi 0, %s158
      %s161 = sphi 0, %s160
      %s175 = sphi 0, %s161
      %s179 = sphi 0, %s179
      %s181 = sphi 0, %s179
      %s182 = sphi 0, %s181
      %s196 = sphi 0, %s182
      %s200 = sphi 0, %s200
      %s202 = sphi 0, %s200
      %s203 = sphi 0, %s202
      %s217 = sphi 0, %s203
      %s221 = sphi 0, %s221
      %s223 = sphi 0, %s221
      %s224 = sphi 0, %s223
      %s238 = sphi 0, %s224
      %s244 = sphi 0, %s246
      %s247 = sphi 0, %s244
      %s248 = sphi 0, %s247
      %s264 = sphi 0, %s248
    $region4: #{attentionb_forward.1} parent=1 // loop_header_branch
      %22 = sbr.rel (%p20) target = $region8
    $region5: #{attentionb_forward.1} parent=1 // loop_body
      %s24 = ssub.s32 %s19, 1
      %s25 = ssub.s32 %s19, 2
      %s26 = sadd.s32 %s19, 1
      %s27 = ssub.s32 %s19, %s26
      %p28 = scmp.eq.s32.totalorder %s27, 0
      %s30 = sadd.s32 %s29, 1
      %s31 = scalar_select %p28, %s29, %s30
      %p34 = pneg %p28
      %p35 = scmp.eq.s32.totalorder %s19, 1
      %p36 = por %p34, %p35
      %p37 = scmp.ne.s32.totalorder %s29, %s32
      %p38 = scmp.eq.s32.totalorder %s19, 0
      %p39 = por %p37, %p38
      %p40 = scmp.ne.s32.totalorder %s29, %s32
      %p41 = scmp.eq.s32.totalorder %s24, 1
      %p42 = por %p40, %p41
      %p43 = scmp.ne.s32.totalorder %s32, %s33
      %p44 = scmp.eq.s32.totalorder %s24, 0
      %p45 = por %p43, %p44
      %p46 = scmp.ne.s32.totalorder %s32, %s33
      %p47 = scmp.eq.s32.totalorder %s25, 1
      %p48 = por %p46, %p47
      %p50 = scmp.ne.s32.totalorder %s33, %s49
      %p51 = scmp.eq.s32.totalorder %s25, 0
      %p52 = por %p50, %p51
      %s54 = sadd.s32 %s53, 1
      %p57 = scmp.eq.s32.totalorder %s19, 1
      %p58 = scmp.ne.s32.totalorder %s53, %s55
      %p59 = scmp.eq.s32.totalorder %s19, 0
      %p60 = por %p58, %p59
      %p61 = scmp.ne.s32.totalorder %s53, %s55
      %p62 = scmp.eq.s32.totalorder %s24, 1
      %p63 = por %p61, %p62
      %p64 = scmp.ne.s32.totalorder %s55, %s56
      %p65 = scmp.eq.s32.totalorder %s24, 0
      %p66 = por %p64, %p65
      %p67 = scmp.ne.s32.totalorder %s55, %s56
      %p68 = scmp.eq.s32.totalorder %s25, 1
      %p69 = por %p67, %p68
      %p71 = scmp.ne.s32.totalorder %s56, %s70
      %p72 = scmp.eq.s32.totalorder %s25, 0
      %p73 = por %p71, %p72
      %s75 = sadd.s32 %s74, 1
      %p78 = scmp.eq.s32.totalorder %s19, 1
      %p79 = scmp.ne.s32.totalorder %s74, %s76
      %p80 = scmp.eq.s32.totalorder %s19, 0
      %p81 = por %p79, %p80
      %p82 = scmp.ne.s32.totalorder %s74, %s76
      %p83 = scmp.eq.s32.totalorder %s24, 1
      %p84 = por %p82, %p83
      %p85 = scmp.ne.s32.totalorder %s76, %s77
      %p86 = scmp.eq.s32.totalorder %s24, 0
      %p87 = por %p85, %p86
      %p88 = scmp.ne.s32.totalorder %s76, %s77
      %p89 = scmp.eq.s32.totalorder %s25, 1
      %p90 = por %p88, %p89
      %p92 = scmp.ne.s32.totalorder %s77, %s91
      %p93 = scmp.eq.s32.totalorder %s25, 0
      %p94 = por %p92, %p93
      %s96 = sadd.s32 %s95, 1
      %p99 = scmp.eq.s32.totalorder %s19, 1
      %p100 = scmp.ne.s32.totalorder %s95, %s97
      %p101 = scmp.eq.s32.totalorder %s19, 0
      %p102 = por %p100, %p101
      %p103 = scmp.ne.s32.totalorder %s95, %s97
      %p104 = scmp.eq.s32.totalorder %s24, 1
      %p105 = por %p103, %p104
      %p106 = scmp.ne.s32.totalorder %s97, %s98
      %p107 = scmp.eq.s32.totalorder %s24, 0
      %p108 = por %p106, %p107
      %p109 = scmp.ne.s32.totalorder %s97, %s98
      %p110 = scmp.eq.s32.totalorder %s25, 1
      %p111 = por %p109, %p110
      %p113 = scmp.ne.s32.totalorder %s98, %s112
      %p114 = scmp.eq.s32.totalorder %s25, 0
      %p115 = por %p113, %p114
      %s117 = sadd.s32 %s116, 1
      %p120 = scmp.eq.s32.totalorder %s19, 1
      %p121 = scmp.ne.s32.totalorder %s116, %s118
      %p122 = scmp.eq.s32.totalorder %s19, 0
      %p123 = por %p121, %p122
      %p124 = scmp.ne.s32.totalorder %s116, %s118
      %p125 = scmp.eq.s32.totalorder %s24, 1
      %p126 = por %p124, %p125
      %p127 = scmp.ne.s32.totalorder %s118, %s119
      %p128 = scmp.eq.s32.totalorder %s24, 0
      %p129 = por %p127, %p128
      %p130 = scmp.ne.s32.totalorder %s118, %s119
      %p131 = scmp.eq.s32.totalorder %s25, 1
      %p132 = por %p130, %p131
      %p134 = scmp.ne.s32.totalorder %s119, %s133
      %p135 = scmp.eq.s32.totalorder %s25, 0
      %p136 = por %p134, %p135
      %s138 = sadd.s32 %s137, 1
      %p141 = scmp.eq.s32.totalorder %s19, 1
      %p142 = scmp.ne.s32.totalorder %s137, %s139
      %p143 = scmp.eq.s32.totalorder %s19, 0
      %p144 = por %p142, %p143
      %p145 = scmp.ne.s32.totalorder %s137, %s139
      %p146 = scmp.eq.s32.totalorder %s24, 1
      %p147 = por %p145, %p146
      %p148 = scmp.ne.s32.totalorder %s139, %s140
      %p149 = scmp.eq.s32.totalorder %s24, 0
      %p150 = por %p148, %p149
      %p151 = scmp.ne.s32.totalorder %s139, %s140
      %p152 = scmp.eq.s32.totalorder %s25, 1
      %p153 = por %p151, %p152
      %p155 = scmp.ne.s32.totalorder %s140, %s154
      %p156 = scmp.eq.s32.totalorder %s25, 0
      %p157 = por %p155, %p156
      %s159 = sadd.s32 %s158, 1
      %p162 = scmp.eq.s32.totalorder %s19, 1
      %p163 = scmp.ne.s32.totalorder %s158, %s160
      %p164 = scmp.eq.s32.totalorder %s19, 0
      %p165 = por %p163, %p164
      %p166 = scmp.ne.s32.totalorder %s158, %s160
      %p167 = scmp.eq.s32.totalorder %s24, 1
      %p168 = por %p166, %p167
      %p169 = scmp.ne.s32.totalorder %s160, %s161
      %p170 = scmp.eq.s32.totalorder %s24, 0
      %p171 = por %p169, %p170
      %p172 = scmp.ne.s32.totalorder %s160, %s161
      %p173 = scmp.eq.s32.totalorder %s25, 1
      %p174 = por %p172, %p173
      %p176 = scmp.ne.s32.totalorder %s161, %s175
      %p177 = scmp.eq.s32.totalorder %s25, 0
      %p178 = por %p176, %p177
      %s180 = sadd.s32 %s179, 1
      %p183 = scmp.eq.s32.totalorder %s19, 1
      %p184 = scmp.ne.s32.totalorder %s179, %s181
      %p185 = scmp.eq.s32.totalorder %s19, 0
      %p186 = por %p184, %p185
      %p187 = scmp.ne.s32.totalorder %s179, %s181
      %p188 = scmp.eq.s32.totalorder %s24, 1
      %p189 = por %p187, %p188
      %p190 = scmp.ne.s32.totalorder %s181, %s182
      %p191 = scmp.eq.s32.totalorder %s24, 0
      %p192 = por %p190, %p191
      %p193 = scmp.ne.s32.totalorder %s181, %s182
      %p194 = scmp.eq.s32.totalorder %s25, 1
      %p195 = por %p193, %p194
      %p197 = scmp.ne.s32.totalorder %s182, %s196
      %p198 = scmp.eq.s32.totalorder %s25, 0
      %p199 = por %p197, %p198
      %s201 = sadd.s32 %s200, 1
      %p204 = scmp.eq.s32.totalorder %s19, 1
      %p205 = scmp.ne.s32.totalorder %s200, %s202
      %p206 = scmp.eq.s32.totalorder %s19, 0
      %p207 = por %p205, %p206
      %p208 = scmp.ne.s32.totalorder %s200, %s202
      %p209 = scmp.eq.s32.totalorder %s24, 1
      %p210 = por %p208, %p209
      %p211 = scmp.ne.s32.totalorder %s202, %s203
      %p212 = scmp.eq.s32.totalorder %s24, 0
      %p213 = por %p211, %p212
      %p214 = scmp.ne.s32.totalorder %s202, %s203
      %p215 = scmp.eq.s32.totalorder %s25, 1
      %p216 = por %p214, %p215
      %p218 = scmp.ne.s32.totalorder %s203, %s217
      %p219 = scmp.eq.s32.totalorder %s25, 0
      %p220 = por %p218, %p219
      %s222 = sadd.s32 %s221, 1
      %p225 = scmp.eq.s32.totalorder %s19, 1
      %p226 = scmp.ne.s32.totalorder %s221, %s223
      %p227 = scmp.eq.s32.totalorder %s19, 0
      %p228 = por %p226, %p227
      %p229 = scmp.ne.s32.totalorder %s221, %s223
      %p230 = scmp.eq.s32.totalorder %s24, 1
      %p231 = por %p229, %p230
      %p232 = scmp.ne.s32.totalorder %s223, %s224
      %p233 = scmp.eq.s32.totalorder %s24, 0
      %p234 = por %p232, %p233
      %p235 = scmp.ne.s32.totalorder %s223, %s224
      %p236 = scmp.eq.s32.totalorder %s25, 1
      %p237 = por %p235, %p236
      %p239 = scmp.ne.s32.totalorder %s224, %s238
      %p240 = scmp.eq.s32.totalorder %s25, 0
      %p241 = por %p239, %p240
      %s242 = ssub.s32 %s19, %s26
      %p243 = scmp.eq.s32.totalorder %s242, 0
      %s245 = sadd.s32 %s244, 1
      %s246 = scalar_select %p243, %s244, %s245
      %p249 = pneg %p243
      %p250 = scmp.eq.s32.totalorder %s19, 1
      %p251 = por %p249, %p250
      %p252 = scmp.ne.s32.totalorder %s244, %s247
      %p253 = scmp.eq.s32.totalorder %s19, 0
      %p254 = por %p252, %p253
      %p255 = scmp.ne.s32.totalorder %s244, %s247
      %p256 = scmp.eq.s32.totalorder %s24, 1
      %p257 = por %p255, %p256
      %p258 = scmp.ne.s32.totalorder %s247, %s248
      %p259 = scmp.eq.s32.totalorder %s24, 0
      %p260 = por %p258, %p259
      %p261 = scmp.ne.s32.totalorder %s247, %s248
      %p262 = scmp.eq.s32.totalorder %s25, 1
      %p263 = por %p261, %p262
      %p265 = scmp.ne.s32.totalorder %s248, %s264
      %p266 = scmp.eq.s32.totalorder %s25, 0
      %p267 = por %p265, %p266
      %p268 = scmp.le.s32.totalorder 1, %s19
      %p269 = scmp.lt.s32.totalorder %s19, 3
      %p270 = pnand %p268, %p269
      %p271 = pneg %p270
      // Predicated region
      $region9: #{attentionb_forward.1} parent=5 // pred_check
        _
      $region10: #{attentionb_forward.1} parent=5 // pred_check_branch
        %273 = sbr.rel (%p270) target = $region12
      $region11: #{attentionb_forward.1} parent=5 // pred_region
        %s274 = ssub.s32 %s19, 1
        // Predicated region
        $region13: #{attentionb_forward.1} parent=11 // pred_check
          %p275 = pneg %p66
        $region14: #{attentionb_forward.1} parent=11 // pred_check_branch
          %277 = sbr.rel (%p275) target = $region16
        $region15: #{attentionb_forward.1} parent=11 // pred_region
          _
        $region16: #{attentionb_forward.1} parent=11 // pred_fallthru
          _
        // Predicated region
        $region17: #{attentionb_forward.1} parent=11 // pred_check
          %p278 = pneg %p87
        $region18: #{attentionb_forward.1} parent=11 // pred_check_branch
          %280 = sbr.rel (%p278) target = $region20
        $region19: #{attentionb_forward.1} parent=11 // pred_region
          _
        $region20: #{attentionb_forward.1} parent=11 // pred_fallthru
          _
        // Predicated region
        $region21: #{attentionb_forward.1} parent=11 // pred_check
          %p281 = pneg %p108
        $region22: #{attentionb_forward.1} parent=11 // pred_check_branch
          %283 = sbr.rel (%p281) target = $region24
        $region23: #{attentionb_forward.1} parent=11 // pred_region
          _
        $region24: #{attentionb_forward.1} parent=11 // pred_fallthru
          _
        // Predicated region
        $region25: #{attentionb_forward.1} parent=11 // pred_check
          %p284 = pneg %p129
        $region26: #{attentionb_forward.1} parent=11 // pred_check_branch
          %286 = sbr.rel (%p284) target = $region28
        $region27: #{attentionb_forward.1} parent=11 // pred_region
          _
        $region28: #{attentionb_forward.1} parent=11 // pred_fallthru
          _
        // Predicated region
        $region29: #{attentionb_forward.1} parent=11 // pred_check
          %p287 = pneg %p150
        $region30: #{attentionb_forward.1} parent=11 // pred_check_branch
          %289 = sbr.rel (%p287) target = $region32
        $region31: #{attentionb_forward.1} parent=11 // pred_region
          _
        $region32: #{attentionb_forward.1} parent=11 // pred_fallthru
          _
        // Predicated region
        $region33: #{attentionb_forward.1} parent=11 // pred_check
          %p290 = pneg %p171
        $region34: #{attentionb_forward.1} parent=11 // pred_check_branch
          %292 = sbr.rel (%p290) target = $region36
        $region35: #{attentionb_forward.1} parent=11 // pred_region
          _
        $region36: #{attentionb_forward.1} parent=11 // pred_fallthru
          _
        // Predicated region
        $region37: #{attentionb_forward.1} parent=11 // pred_check
          %p293 = pneg %p192
        $region38: #{attentionb_forward.1} parent=11 // pred_check_branch
          %295 = sbr.rel (%p293) target = $region40
        $region39: #{attentionb_forward.1} parent=11 // pred_region
          _
        $region40: #{attentionb_forward.1} parent=11 // pred_fallthru
          _
        // Predicated region
        $region41: #{attentionb_forward.1} parent=11 // pred_check
          %p296 = pneg %p213
        $region42: #{attentionb_forward.1} parent=11 // pred_check_branch
          %298 = sbr.rel (%p296) target = $region44
        $region43: #{attentionb_forward.1} parent=11 // pred_region
          _
        $region44: #{attentionb_forward.1} parent=11 // pred_fallthru
          _
        // Predicated region
        $region45: #{attentionb_forward.1} parent=11 // pred_check
          %p299 = pneg %p234
        $region46: #{attentionb_forward.1} parent=11 // pred_check_branch
          %301 = sbr.rel (%p299) target = $region48
        $region47: #{attentionb_forward.1} parent=11 // pred_region
          _
        $region48: #{attentionb_forward.1} parent=11 // pred_fallthru
          _
      $region12: #{attentionb_forward.1} parent=5 // pred_fallthru
        _
      %p302 = scmp.lt.s32.totalorder %s19, 2
      // Predicated region
      $region49: #{attentionb_forward.1} parent=5 // pred_check
        %p303 = pneg %p302
      $region50: #{attentionb_forward.1} parent=5 // pred_check_branch
        %305 = sbr.rel (%p303) target = $region52
      $region51: #{attentionb_forward.1} parent=5 // pred_region
        // Predicated region
        $region53: #{attentionb_forward.1} parent=51 // pred_check
          %p306 = pneg %p39
        $region54: #{attentionb_forward.1} parent=51 // pred_check_branch
          %308 = sbr.rel (%p306) target = $region56
        $region55: #{attentionb_forward.1} parent=51 // pred_region
          %p309 = scmp.lt.s32.totalorder %s19, 1
          %s310 = scalar_select %p309, %s19, 1
          %s311 = smul.addr %s310, 2
          %s312 = smul.addr %s311, 8
          %s313 = scalar_lea.vmem %s0, %s312
        $region56: #{attentionb_forward.1} parent=51 // pred_fallthru
          _
      $region52: #{attentionb_forward.1} parent=5 // pred_fallthru
        _
      %p314 = scmp.le.s32.totalorder 1, %s19
      %p315 = scmp.lt.s32.totalorder %s19, 3
      %p316 = pnand %p314, %p315
      %p317 = pneg %p316
      // Predicated region
      $region57: #{attentionb_forward.1} parent=5 // pred_check
        _
      $region58: #{attentionb_forward.1} parent=5 // pred_check_branch
        %319 = sbr.rel (%p316) target = $region60
      $region59: #{attentionb_forward.1} parent=5 // pred_region
        %s320 = ssub.s32 %s19, 1
        %p321 = scmp.lt.s32.totalorder %s24, 1
        %s322 = scalar_select %p321, %s24, 1
        %s323 = smul.addr %s322, 2
        %s324 = smul.addr %s323, 8
        %s325 = scalar_lea.vmem %s0, %s324
        %p326 = pneg %p45
        %p327 = pneg %p42
        %p328 = pneg %p66
        %p329 = pneg %p63
        %p330 = pneg %p87
        %p331 = pneg %p84
        %p332 = pneg %p108
        %p333 = pneg %p105
        %p334 = pneg %p129
        %p335 = pneg %p126
        %p336 = pneg %p150
        %p337 = pneg %p147
        %p338 = pneg %p171
        %p339 = pneg %p168
        %p340 = pneg %p192
        %p341 = pneg %p189
        %p342 = pneg %p213
        %p343 = pneg %p210
        %p344 = pneg %p234
        %p345 = pneg %p231
        %p346 = pneg %p260
        %p347 = pneg %p257
        %s348 = sand.u32 %s247, 1
        %s349 = scalar_lea.sflag [#allocation3], %s348
        %s350 = sand.u32 %s247, 1
        %s351 = smul.addr %s350, 16
        %s352 = scalar_lea.vmem [#allocation2], %s351
        %p353 = scmp.lt.s32.totalorder %s24, 1
        %s354 = scalar_select %p353, %s24, 1
        %s355 = smul.addr %s354, 2
        %s356 = smul.addr %s355, 8
        %s357 = scalar_lea.vmem %s0, %s356
        %v359 = vld [vmem:[%s357] sm:$0xff]
        %v360 = vld [vmem:[%s357 + $0x8] sm:$0xff]
        %361 = vadd.xlane.f32.xlu0 %v359
        %v362 = vpop.xlane.xlu0 %361
        %363 = vadd.xlane.f32.xlu0 %v360
        %v364 = vpop.xlane.xlu0 %363
        %v365 = vrcp.pop 128.0
        %v366 = vmul.f32 %v362, %v365
        %v367 = vmul.f32 %v364, %v365
        %v368 = vsub.f32 %v359, %v366
        %v369 = vsub.f32 %v360, %v367
        %v370 = vmul.f32 %v368, %v368
        %v371 = vmul.f32 %v369, %v369
        %372 = vadd.xlane.f32.xlu0 %v370
        %v373 = vpop.xlane.xlu0 %372
        %374 = vadd.xlane.f32.xlu0 %v371
        %v375 = vpop.xlane.xlu0 %374
        %v376 = vmul.f32 %v373, %v365
        %v377 = vmul.f32 %v375, %v365
        %v378 = vadd.f32 %v376, 1e-05
        %v379 = vadd.f32 %v377, 1e-05
        %v380 = vrsqrt.pop %v378
        %v381 = vrsqrt.pop %v379
        %v382 = vmul.f32 %v368, %v380
        %v383 = vmul.f32 %v369, %v381
        %v384 = vld [vmem:[%s1] sm:$0x1]
        %v386 = vlaneseq
        %v387 = vshrl.u32 %v386, 7
        %v388 = vsub.s32 0, %v387
        %v389 = vrot.slane %v384, %v388
        %v391 = vmul.f32 %v382, %v389
        %v392 = vmul.f32 %v383, %v389
        %v393 = vpack.c.bf16 %v392, %v391
        %v394 = vld [vmem:[%s2] sm:$0xff]
        %v395 = vld [vmem:[%s2 + $0x8] sm:$0xf]
        %v396 = vld [vmem:[%s2 + $0xc] sm:$0xff]
        %v397 = vld [vmem:[%s2 + $0x14] sm:$0xf]
        %v398 = vld [vmem:[%s2 + $0x18] sm:$0xff]
        %v399 = vld [vmem:[%s2 + $0x20] sm:$0xf]
        %v400 = vld [vmem:[%s2 + $0x24] sm:$0xff]
        %v401 = vld [vmem:[%s2 + $0x2c] sm:$0xf]
        %v402 = vld [vmem:[%s2 + $0x30] sm:$0xff]
        %v403 = vld [vmem:[%s2 + $0x38] sm:$0xf]
        %v404 = vld [vmem:[%s2 + $0x3c] sm:$0xff]
        %v405 = vld [vmem:[%s2 + $0x44] sm:$0xf]
        %v406 = vld [vmem:[%s2 + $0x48] sm:$0xff]
        %v407 = vld [vmem:[%s2 + $0x50] sm:$0xf]
        %v408 = vld [vmem:[%s2 + $0x54] sm:$0xff]
        %v409 = vld [vmem:[%s2 + $0x5c] sm:$0xf]
        %v410 = vld [vmem:[%s2 + $0x60] sm:$0xff]
        %v411 = vld [vmem:[%s2 + $0x68] sm:$0xf]
        %v412 = vld [vmem:[%s2 + $0x6c] sm:$0xff]
        %v413 = vld [vmem:[%s2 + $0x74] sm:$0xf]
        %v414 = vld [vmem:[%s2 + $0x78] sm:$0xff]
        %v415 = vld [vmem:[%s2 + $0x80] sm:$0xf]
        %v416 = vld [vmem:[%s2 + $0x84] sm:$0xff]
        %v417 = vld [vmem:[%s2 + $0x8c] sm:$0xf]
        %v418 = vld [vmem:[%s2 + $0x90] sm:$0xff]
        %v419 = vld [vmem:[%s2 + $0x98] sm:$0xf]
        %v420 = vld [vmem:[%s2 + $0x9c] sm:$0xff]
        %v421 = vld [vmem:[%s2 + $0xa4] sm:$0xf]
        %v422 = vld [vmem:[%s2 + $0xa8] sm:$0xff]
        %v423 = vld [vmem:[%s2 + $0xb0] sm:$0xf]
        %v424 = vld [vmem:[%s2 + $0xb4] sm:$0xff]
        %v425 = vld [vmem:[%s2 + $0xbc] sm:$0xf]
        %v426 = vld [vmem:[%s3] sm:$0x7]
        %v428 = vlaneseq
        %v429 = vshrl.u32 %v428, 7
        %v430 = vsub.s32 0, %v429
        %v431 = vrot.slane %v426, %v430
        %v432 = vlaneseq
        %v433 = vshrl.u32 %v432, 7
        %v434 = vsub.s32 1, %v433
        %v435 = vrot.slane %v426, %v434
        %v436 = vlaneseq
        %v437 = vshrl.u32 %v436, 7
        %v438 = vsub.s32 2, %v437
        %v439 = vrot.slane %v426, %v438
        %v475 = vunpack.c.l.b16 %v394
        %v476 = vunpack.c.h.b16 %v394
        %v477 = vunpack.c.l.b16 %v395
        %v478 = vunpack.c.l.b16 %v396
        %v479 = vunpack.c.h.b16 %v396
        %v480 = vunpack.c.l.b16 %v397
        %v481 = vunpack.c.l.b16 %v398
        %v482 = vunpack.c.h.b16 %v398
        %v483 = vunpack.c.l.b16 %v399
        %v484 = vunpack.c.l.b16 %v400
        %v485 = vunpack.c.h.b16 %v400
        %v486 = vunpack.c.l.b16 %v401
        %v487 = vunpack.c.l.b16 %v402
        %v488 = vunpack.c.h.b16 %v402
        %v489 = vunpack.c.l.b16 %v403
        %v490 = vunpack.c.l.b16 %v404
        %v491 = vunpack.c.h.b16 %v404
        %v492 = vunpack.c.l.b16 %v405
        %v493 = vunpack.c.l.b16 %v406
        %v494 = vunpack.c.h.b16 %v406
        %v495 = vunpack.c.l.b16 %v407
        %v496 = vunpack.c.l.b16 %v408
        %v497 = vunpack.c.h.b16 %v408
        %v498 = vunpack.c.l.b16 %v409
        %v499 = vunpack.c.l.b16 %v410
        %v500 = vunpack.c.h.b16 %v410
        %v501 = vunpack.c.l.b16 %v411
        %v502 = vunpack.c.l.b16 %v412
        %v503 = vunpack.c.h.b16 %v412
        %v504 = vunpack.c.l.b16 %v413
        %v505 = vunpack.c.l.b16 %v414
        %v506 = vunpack.c.h.b16 %v414
        %v507 = vunpack.c.l.b16 %v415
        %v508 = vunpack.c.l.b16 %v416
        %v509 = vunpack.c.h.b16 %v416
        %v510 = vunpack.c.l.b16 %v417
        %v511 = vunpack.c.l.b16 %v418
        %v512 = vunpack.c.h.b16 %v418
        %v513 = vunpack.c.l.b16 %v419
        %v514 = vunpack.c.l.b16 %v420
        %v515 = vunpack.c.h.b16 %v420
        %v516 = vunpack.c.l.b16 %v421
        %v517 = vunpack.c.l.b16 %v422
        %v518 = vunpack.c.h.b16 %v422
        %v519 = vunpack.c.l.b16 %v423
        %v520 = vunpack.c.l.b16 %v424
        %v521 = vunpack.c.h.b16 %v424
        %v522 = vunpack.c.l.b16 %v425
        %v523 = vpack.c.b16 %v478, %v475
        %v524 = vpack.c.b16 %v479, %v476
        %v525 = vpack.c.b16 %v480, %v477
        %v526 = vpack.c.b16 %v484, %v481
        %v527 = vpack.c.b16 %v485, %v482
        %v528 = vpack.c.b16 %v486, %v483
        %v529 = vpack.c.b16 %v490, %v487
        %v530 = vpack.c.b16 %v491, %v488
        %v531 = vpack.c.b16 %v492, %v489
        %v532 = vpack.c.b16 %v496, %v493
        %v533 = vpack.c.b16 %v497, %v494
        %v534 = vpack.c.b16 %v498, %v495
        %v535 = vpack.c.b16 %v502, %v499
        %v536 = vpack.c.b16 %v503, %v500
        %v537 = vpack.c.b16 %v504, %v501
        %v538 = vpack.c.b16 %v508, %v505
        %v539 = vpack.c.b16 %v509, %v506
        %v540 = vpack.c.b16 %v510, %v507
        %v541 = vpack.c.b16 %v514, %v511
        %v542 = vpack.c.b16 %v515, %v512
        %v543 = vpack.c.b16 %v516, %v513
        %v544 = vpack.c.b16 %v520, %v517
        %v545 = vpack.c.b16 %v521, %v518
        %v546 = vpack.c.b16 %v522, %v519
        %571 = vmatprep.subr.bf16.mxu0 %v524
        %572 = vmatpush1.bf16.msra.mxu0 %v523
        %573 = vmatprep.subr.bf16.mxu0 %v527
        %574 = vmatpush1.bf16.msra.mxu0 %v526
        %575 = vmatprep.subr.bf16.mxu0 %v530
        %576 = vmatpush1.bf16.msra.mxu0 %v529
        %577 = vmatprep.subr.bf16.mxu0 %v533
        %578 = vmatpush1.bf16.msra.mxu0 %v532
        %579 = vmatprep.subr.bf16.mxu0 %v536
        %580 = vmatpush1.bf16.msra.mxu0 %v535
        %581 = vmatprep.subr.bf16.mxu0 %v539
        %582 = vmatpush1.bf16.msra.mxu0 %v538
        %583 = vmatprep.subr.bf16.mxu0 %v542
        %584 = vmatpush1.bf16.msra.mxu0 %v541
        %585 = vmatprep.subr.bf16.mxu0 %v545
        %586 = vmatpush1.bf16.msra.mxu0 %v544
        %587 = vmatprep.subr.bf16.mxu0 0
        %588 = vmatpush1.bf16.msra.mxu0 0
        %589 = vmatprep.subr.bf16.mxu0 0
        %590 = vmatpush1.bf16.msra.mxu0 0
        %591 = vmatprep.subr.bf16.mxu0 0
        %592 = vmatpush1.bf16.msra.mxu0 0
        %593 = vmatprep.subr.bf16.mxu0 0
        %594 = vmatpush1.bf16.msra.mxu0 0
        %595 = vmatprep.subr.bf16.mxu0 0
        %596 = vmatpush1.bf16.msra.mxu0 0
        %597 = vmatprep.subr.bf16.mxu0 0
        %598 = vmatpush1.bf16.msra.mxu0 0
        %599 = vmatprep.subr.bf16.mxu0 0
        %600 = vmatpush1.bf16.msra.mxu0 0
        %601 = vmatprep.subr.bf16.mxu0 0
        %602 = vmatpush1.bf16.msra.mxu0 0
        %603 = vmatprep.mubr.bf16.mxu0 0
        %604 = vmatmul.mubr.bf16.gmra.mrb[0].mxu0 %v393
        %v605 = vpop.f32.mrb[0].mxu0
        %v606 = vadd.f32 %v431, %v605
        %v607 = vpop.f32.mrb[0].mxu0
        %v608 = vadd.f32 %v435, %v607
        %v609 = vpop.f32.mrb[0].mxu0
        %v610 = vadd.f32 %v431, %v609
        %v611 = vpop.f32.mrb[0].mxu0
        %v612 = vadd.f32 %v435, %v611
        %613 = vdwg.mxu0
        %614 = vmatprep.subr.bf16.mxu0 0
        %615 = vmatpush1.bf16.msra.mxu0 %v525
        %616 = vmatprep.subr.bf16.mxu0 0
        %617 = vmatpush1.bf16.msra.mxu0 %v528
        %618 = vmatprep.subr.bf16.mxu0 0
        %619 = vmatpush1.bf16.msra.mxu0 %v531
        %620 = vmatprep.subr.bf16.mxu0 0
        %621 = vmatpush1.bf16.msra.mxu0 %v534
        %622 = vmatprep.subr.bf16.mxu0 0
        %623 = vmatpush1.bf16.msra.mxu0 %v537
        %624 = vmatprep.subr.bf16.mxu0 0
        %625 = vmatpush1.bf16.msra.mxu0 %v540
        %626 = vmatprep.subr.bf16.mxu0 0
        %627 = vmatpush1.bf16.msra.mxu0 %v543
        %628 = vmatprep.subr.bf16.mxu0 0
        %629 = vmatpush1.bf16.msra.mxu0 %v546
        %630 = vmatprep.subr.bf16.mxu0 0
        %631 = vmatpush1.bf16.msra.mxu0 0
        %632 = vmatprep.subr.bf16.mxu0 0
        %633 = vmatpush1.bf16.msra.mxu0 0
        %634 = vmatprep.subr.bf16.mxu0 0
        %635 = vmatpush1.bf16.msra.mxu0 0
        %636 = vmatprep.subr.bf16.mxu0 0
        %637 = vmatpush1.bf16.msra.mxu0 0
        %638 = vmatprep.subr.bf16.mxu0 0
        %639 = vmatpush1.bf16.msra.mxu0 0
        %640 = vmatprep.subr.bf16.mxu0 0
        %641 = vmatpush1.bf16.msra.mxu0 0
        %642 = vmatprep.subr.bf16.mxu0 0
        %643 = vmatpush1.bf16.msra.mxu0 0
        %644 = vmatprep.subr.bf16.mxu0 0
        %645 = vmatpush1.bf16.msra.mxu0 0
        %646 = vmatprep.mubr.bf16.mxu0 0
        %647 = vmatmul.mubr.bf16.gmra.mrb[0].mxu0 %v393
        %v648 = vpop.f32.mrb[0].mxu0
        %v649 = vadd.f32 %v439, %v648
        %v650 = vpop.f32.mrb[0].mxu0
        %v651 = vpop.f32.mrb[0].mxu0
        %v652 = vadd.f32 %v439, %v651
        %v653 = vpop.f32.mrb[0].mxu0
        %654 = vdwg.mxu0
        %v655 = vld [vmem:[%s4] sm:$0xff]
        %v656 = vld [vmem:[%s4 + $0x8] sm:$0xff]
        %v657 = vld [vmem:[%s4 + $0x10] sm:$0xff]
        %v658 = vld [vmem:[%s4 + $0x18] sm:$0xff]
        %v659 = vmul.f32 %v606, %v655
        %v660 = vmul.f32 %v610, %v657
        %661 = vrot.lane.b32.xlu0 %v606, 64
        %v662 = vpop.permute.xlu0 %661
        %663 = vrot.lane.b32.xlu0 %v610, 64
        %v664 = vpop.permute.xlu0 %663
        %v665 = vmul.f32 %v662, %v656
        %v666 = vmul.f32 %v664, %v658
        %v667 = vadd.f32 %v659, %v665
        %v668 = vadd.f32 %v660, %v666
        %v669 = vmul.f32 %v608, %v655
        %v670 = vmul.f32 %v612, %v657
        %671 = vrot.lane.b32.xlu0 %v608, 64
        %v672 = vpop.permute.xlu0 %671
        %673 = vrot.lane.b32.xlu0 %v612, 64
        %v674 = vpop.permute.xlu0 %673
        %v675 = vmul.f32 %v672, %v656
        %v676 = vmul.f32 %v674, %v658
        %v677 = vadd.f32 %v669, %v675
        %v678 = vadd.f32 %v670, %v676
        %v679 = vpack.c.bf16 %v668, %v667
        %v680 = vld [vmem:[%s5] sm:$0xf]
        %v681 = vld [vmem:[%s5 + $0x4] sm:$0xf]
        %v682 = vld [vmem:[%s5 + $0x8] sm:$0xf]
        %v683 = vld [vmem:[%s5 + $0xc] sm:$0xf]
        %v684 = vld [vmem:[%s5 + $0x10] sm:$0xf]
        %v685 = vld [vmem:[%s5 + $0x14] sm:$0xf]
        %v686 = vld [vmem:[%s5 + $0x18] sm:$0xf]
        %v687 = vld [vmem:[%s5 + $0x1c] sm:$0xf]
        %v688 = vld [vmem:[%s5 + $0x20] sm:$0xf]
        %v689 = vld [vmem:[%s5 + $0x24] sm:$0xf]
        %v690 = vld [vmem:[%s5 + $0x28] sm:$0xf]
        %v691 = vld [vmem:[%s5 + $0x2c] sm:$0xf]
        %v692 = vld [vmem:[%s5 + $0x30] sm:$0xf]
        %v693 = vld [vmem:[%s5 + $0x34] sm:$0xf]
        %v694 = vld [vmem:[%s5 + $0x38] sm:$0xf]
        %v695 = vld [vmem:[%s5 + $0x3c] sm:$0xf]
        %v712 = vunpack.c.l.b16 %v680
        %v713 = vunpack.c.l.b16 %v681
        %v714 = vunpack.c.l.b16 %v682
        %v715 = vunpack.c.l.b16 %v683
        %v716 = vunpack.c.l.b16 %v684
        %v717 = vunpack.c.l.b16 %v685
        %v718 = vunpack.c.l.b16 %v686
        %v719 = vunpack.c.l.b16 %v687
        %v720 = vunpack.c.l.b16 %v688
        %v721 = vunpack.c.l.b16 %v689
        %v722 = vunpack.c.l.b16 %v690
        %v723 = vunpack.c.l.b16 %v691
        %v724 = vunpack.c.l.b16 %v692
        %v725 = vunpack.c.l.b16 %v693
        %v726 = vunpack.c.l.b16 %v694
        %v727 = vunpack.c.l.b16 %v695
        %v728 = vpack.c.b16 %v713, %v712
        %v729 = vpack.c.b16 %v715, %v714
        %v730 = vpack.c.b16 %v717, %v716
        %v731 = vpack.c.b16 %v719, %v718
        %v732 = vpack.c.b16 %v721, %v720
        %v733 = vpack.c.b16 %v723, %v722
        %v734 = vpack.c.b16 %v725, %v724
        %v735 = vpack.c.b16 %v727, %v726
        %744 = vmatprep.subr.bf16.mxu0 0
        %745 = vmatpush1.bf16.msra.mxu0 %v728
        %746 = vmatprep.subr.bf16.mxu0 0
        %747 = vmatpush1.bf16.msra.mxu0 %v729
        %748 = vmatprep.subr.bf16.mxu0 0
        %749 = vmatpush1.bf16.msra.mxu0 %v730
        %750 = vmatprep.subr.bf16.mxu0 0
        %751 = vmatpush1.bf16.msra.mxu0 %v731
        %752 = vmatprep.subr.bf16.mxu0 0
        %753 = vmatpush1.bf16.msra.mxu0 %v732
        %754 = vmatprep.subr.bf16.mxu0 0
        %755 = vmatpush1.bf16.msra.mxu0 %v733
        %756 = vmatprep.subr.bf16.mxu0 0
        %757 = vmatpush1.bf16.msra.mxu0 %v734
        %758 = vmatprep.subr.bf16.mxu0 0
        %759 = vmatpush1.bf16.msra.mxu0 %v735
        %760 = vmatprep.subr.bf16.mxu0 0
        %761 = vmatpush1.bf16.msra.mxu0 0
        %762 = vmatprep.subr.bf16.mxu0 0
        %763 = vmatpush1.bf16.msra.mxu0 0
        %764 = vmatprep.subr.bf16.mxu0 0
        %765 = vmatpush1.bf16.msra.mxu0 0
        %766 = vmatprep.subr.bf16.mxu0 0
        %767 = vmatpush1.bf16.msra.mxu0 0
        %768 = vmatprep.subr.bf16.mxu0 0
        %769 = vmatpush1.bf16.msra.mxu0 0
        %770 = vmatprep.subr.bf16.mxu0 0
        %771 = vmatpush1.bf16.msra.mxu0 0
        %772 = vmatprep.subr.bf16.mxu0 0
        %773 = vmatpush1.bf16.msra.mxu0 0
        %774 = vmatprep.subr.bf16.mxu0 0
        %775 = vmatpush1.bf16.msra.mxu0 0
        %776 = vmatprep.mubr.bf16.mxu0 0
        %777 = vmatmul.mubr.bf16.gmra.mrb[0].mxu0 %v679
        %v778 = vpop.f32.mrb[0].mxu0
        %v779 = vadd.f32 0.0, %v778
        %v780 = vpop.f32.mrb[0].mxu0
        %v781 = vpop.f32.mrb[0].mxu0
        %v782 = vadd.f32 0.0, %v781
        %v783 = vpop.f32.mrb[0].mxu0
        %784 = vdwg.mxu0
        %v785 = vmul.f32 %v667, %v667
        %v786 = vmul.f32 %v668, %v668
        %v787 = vpack.c.bf16 %v786, %v785
        %788 = vmatprep.subr.bf16.mxu0 0
        %789 = vmatpush1.bf16.msra.mxu0 %v728
        %790 = vmatprep.subr.bf16.mxu0 0
        %791 = vmatpush1.bf16.msra.mxu0 %v729
        %792 = vmatprep.subr.bf16.mxu0 0
        %793 = vmatpush1.bf16.msra.mxu0 %v730
        %794 = vmatprep.subr.bf16.mxu0 0
        %795 = vmatpush1.bf16.msra.mxu0 %v731
        %796 = vmatprep.subr.bf16.mxu0 0
        %797 = vmatpush1.bf16.msra.mxu0 %v732
        %798 = vmatprep.subr.bf16.mxu0 0
        %799 = vmatpush1.bf16.msra.mxu0 %v733
        %800 = vmatprep.subr.bf16.mxu0 0
        %801 = vmatpush1.bf16.msra.mxu0 %v734
        %802 = vmatprep.subr.bf16.mxu0 0
        %803 = vmatpush1.bf16.msra.mxu0 %v735
        %804 = vmatprep.subr.bf16.mxu0 0
        %805 = vmatpush1.bf16.msra.mxu0 0
        %806 = vmatprep.subr.bf16.mxu0 0
        %807 = vmatpush1.bf16.msra.mxu0 0
        %808 = vmatprep.subr.bf16.mxu0 0
        %809 = vmatpush1.bf16.msra.mxu0 0
        %810 = vmatprep.subr.bf16.mxu0 0
        %811 = vmatpush1.bf16.msra.mxu0 0
        %812 = vmatprep.subr.bf16.mxu0 0
        %813 = vmatpush1.bf16.msra.mxu0 0
        %814 = vmatprep.subr.bf16.mxu0 0
        %815 = vmatpush1.bf16.msra.mxu0 0
        %816 = vmatprep.subr.bf16.mxu0 0
        %817 = vmatpush1.bf16.msra.mxu0 0
        %818 = vmatprep.subr.bf16.mxu0 0
        %819 = vmatpush1.bf16.msra.mxu0 0
        %820 = vmatprep.mubr.bf16.mxu0 0
        %821 = vmatmul.mubr.bf16.gmra.mrb[0].mxu0 %v787
        %v822 = vpop.f32.mrb[0].mxu0
        %v823 = vadd.f32 0.0, %v822
        %v824 = vpop.f32.mrb[0].mxu0
        %v825 = vpop.f32.mrb[0].mxu0
        %v826 = vadd.f32 0.0, %v825
        %v827 = vpop.f32.mrb[0].mxu0
        %828 = vdwg.mxu0
        %v829 = vmul.f32 %v779, %v779
        %v830 = vmul.f32 %v782, %v782
        %v831 = vsub.f32 %v823, %v829
        %v832 = vsub.f32 %v826, %v830
        %v833 = vmax.f32 %v831, 0.0
        %v834 = vmax.f32 %v832, 0.0
        %v835 = vsub.f32 %v667, %v779
        %v836 = vsub.f32 %v668, %v782
        %v837 = vadd.f32 %v833, 1e-05
        %v838 = vadd.f32 %v834, 1e-05
        %v839 = vrsqrt.pop %v837
        %v840 = vrsqrt.pop %v838
        %v841 = vmul.f32 %v835, %v839
        %v842 = vmul.f32 %v836, %v840
        %v843 = vpack.c.bf16 %v842, %v841
        %v844 = vld [vmem:[%s6] sm:$0xf]
        %v845 = vld [vmem:[%s6 + $0x4] sm:$0xf]
        %v846 = vld [vmem:[%s6 + $0x8] sm:$0xf]
        %v847 = vld [vmem:[%s6 + $0xc] sm:$0xf]
        %v848 = vld [vmem:[%s6 + $0x10] sm:$0xf]
        %v849 = vld [vmem:[%s6 + $0x14] sm:$0xf]
        %v850 = vld [vmem:[%s6 + $0x18] sm:$0xf]
        %v851 = vld [vmem:[%s6 + $0x1c] sm:$0xf]
        %v852 = vld [vmem:[%s6 + $0x20] sm:$0xf]
        %v853 = vld [vmem:[%s6 + $0x24] sm:$0xf]
        %v854 = vld [vmem:[%s6 + $0x28] sm:$0xf]
        %v855 = vld [vmem:[%s6 + $0x2c] sm:$0xf]
        %v856 = vld [vmem:[%s6 + $0x30] sm:$0xf]
        %v857 = vld [vmem:[%s6 + $0x34] sm:$0xf]
        %v858 = vld [vmem:[%s6 + $0x38] sm:$0xf]
        %v859 = vld [vmem:[%s6 + $0x3c] sm:$0xf]
        %v876 = vunpack.c.l.b16 %v844
        %v877 = vunpack.c.l.b16 %v845
        %v878 = vunpack.c.l.b16 %v846
        %v879 = vunpack.c.l.b16 %v847
        %v880 = vunpack.c.l.b16 %v848
        %v881 = vunpack.c.l.b16 %v849
        %v882 = vunpack.c.l.b16 %v850
        %v883 = vunpack.c.l.b16 %v851
        %v884 = vunpack.c.l.b16 %v852
        %v885 = vunpack.c.l.b16 %v853
        %v886 = vunpack.c.l.b16 %v854
        %v887 = vunpack.c.l.b16 %v855
        %v888 = vunpack.c.l.b16 %v856
        %v889 = vunpack.c.l.b16 %v857
        %v890 = vunpack.c.l.b16 %v858
        %v891 = vunpack.c.l.b16 %v859
        %v892 = vpack.c.b16 %v877, %v876
        %v893 = vpack.c.b16 %v879, %v878
        %v894 = vpack.c.b16 %v881, %v880
        %v895 = vpack.c.b16 %v883, %v882
        %v896 = vpack.c.b16 %v885, %v884
        %v897 = vpack.c.b16 %v887, %v886
        %v898 = vpack.c.b16 %v889, %v888
        %v899 = vpack.c.b16 %v891, %v890
        %908 = vmatprep.subr.bf16.mxu0 0
        %909 = vmatpush1.bf16.msra.mxu0 %v892
        %910 = vmatprep.subr.bf16.mxu0 0
        %911 = vmatpush1.bf16.msra.mxu0 %v893
        %912 = vmatprep.subr.bf16.mxu0 0
        %913 = vmatpush1.bf16.msra.mxu0 %v894
        %914 = vmatprep.subr.bf16.mxu0 0
        %915 = vmatpush1.bf16.msra.mxu0 %v895
        %916 = vmatprep.subr.bf16.mxu0 0
        %917 = vmatpush1.bf16.msra.mxu0 %v896
        %918 = vmatprep.subr.bf16.mxu0 0
        %919 = vmatpush1.bf16.msra.mxu0 %v897
        %920 = vmatprep.subr.bf16.mxu0 0
        %921 = vmatpush1.bf16.msra.mxu0 %v898
        %922 = vmatprep.subr.bf16.mxu0 0
        %923 = vmatpush1.bf16.msra.mxu0 %v899
        %924 = vmatprep.subr.bf16.mxu0 0
        %925 = vmatpush1.bf16.msra.mxu0 0
        %926 = vmatprep.subr.bf16.mxu0 0
        %927 = vmatpush1.bf16.msra.mxu0 0
        %928 = vmatprep.subr.bf16.mxu0 0
        %929 = vmatpush1.bf16.msra.mxu0 0
        %930 = vmatprep.subr.bf16.mxu0 0
        %931 = vmatpush1.bf16.msra.mxu0 0
        %932 = vmatprep.subr.bf16.mxu0 0
        %933 = vmatpush1.bf16.msra.mxu0 0
        %934 = vmatprep.subr.bf16.mxu0 0
        %935 = vmatpush1.bf16.msra.mxu0 0
        %936 = vmatprep.subr.bf16.mxu0 0
        %937 = vmatpush1.bf16.msra.mxu0 0
        %938 = vmatprep.subr.bf16.mxu0 0
        %939 = vmatpush1.bf16.msra.mxu0 0
        %940 = vmatprep.mubr.bf16.mxu0 0
        %941 = vmatmul.mubr.bf16.gmra.mrb[0].mxu0 %v843
        %v942 = vpop.f32.mrb[0].mxu0
        %v943 = vadd.f32 0.0, %v942
        %v944 = vpop.f32.mrb[0].mxu0
        %v945 = vpop.f32.mrb[0].mxu0
        %v946 = vadd.f32 0.0, %v945
        %v947 = vpop.f32.mrb[0].mxu0
        %948 = vdwg.mxu0
        %v949 = vpack.c.bf16 %v678, %v677
        %950 = vmatprep.subr.bf16.mxu0 0
        %951 = vmatpush1.bf16.msra.mxu0 %v728
        %952 = vmatprep.subr.bf16.mxu0 0
        %953 = vmatpush1.bf16.msra.mxu0 %v729
        %954 = vmatprep.subr.bf16.mxu0 0
        %955 = vmatpush1.bf16.msra.mxu0 %v730
        %956 = vmatprep.subr.bf16.mxu0 0
        %957 = vmatpush1.bf16.msra.mxu0 %v731
        %958 = vmatprep.subr.bf16.mxu0 0
        %959 = vmatpush1.bf16.msra.mxu0 %v732
        %960 = vmatprep.subr.bf16.mxu0 0
        %961 = vmatpush1.bf16.msra.mxu0 %v733
        %962 = vmatprep.subr.bf16.mxu0 0
        %963 = vmatpush1.bf16.msra.mxu0 %v734
        %964 = vmatprep.subr.bf16.mxu0 0
        %965 = vmatpush1.bf16.msra.mxu0 %v735
        %966 = vmatprep.subr.bf16.mxu0 0
        %967 = vmatpush1.bf16.msra.mxu0 0
        %968 = vmatprep.subr.bf16.mxu0 0
        %969 = vmatpush1.bf16.msra.mxu0 0
        %970 = vmatprep.subr.bf16.mxu0 0
        %971 = vmatpush1.bf16.msra.mxu0 0
        %972 = vmatprep.subr.bf16.mxu0 0
        %973 = vmatpush1.bf16.msra.mxu0 0
        %974 = vmatprep.subr.bf16.mxu0 0
        %975 = vmatpush1.bf16.msra.mxu0 0
        %976 = vmatprep.subr.bf16.mxu0 0
        %977 = vmatpush1.bf16.msra.mxu0 0
        %978 = vmatprep.subr.bf16.mxu0 0
        %979 = vmatpush1.bf16.msra.mxu0 0
        %980 = vmatprep.subr.bf16.mxu0 0
        %981 = vmatpush1.bf16.msra.mxu0 0
        %982 = vmatprep.mubr.bf16.mxu0 0
        %983 = vmatmul.mubr.bf16.gmra.mrb[0].mxu0 %v949
        %v984 = vpop.f32.mrb[0].mxu0
        %v985 = vadd.f32 0.0, %v984
        %v986 = vpop.f32.mrb[0].mxu0
        %v987 = vpop.f32.mrb[0].mxu0
        %v988 = vadd.f32 0.0, %v987
        %v989 = vpop.f32.mrb[0].mxu0
        %990 = vdwg.mxu0
        %v991 = vmul.f32 %v677, %v677
        %v992 = vmul.f32 %v678, %v678
        %v993 = vpack.c.bf16 %v992, %v991
        %994 = vmatprep.subr.bf16.mxu0 0
        %995 = vmatpush1.bf16.msra.mxu0 %v728
        %996 = vmatprep.subr.bf16.mxu0 0
        %997 = vmatpush1.bf16.msra.mxu0 %v729
        %998 = vmatprep.subr.bf16.mxu0 0
        %999 = vmatpush1.bf16.msra.mxu0 %v730
        %1000 = vmatprep.subr.bf16.mxu0 0
        %1001 = vmatpush1.bf16.msra.mxu0 %v731
        %1002 = vmatprep.subr.bf16.mxu0 0
        %1003 = vmatpush1.bf16.msra.mxu0 %v732
        %1004 = vmatprep.subr.bf16.mxu0 0
        %1005 = vmatpush1.bf16.msra.mxu0 %v733
        %1006 = vmatprep.subr.bf16.mxu0 0
        %1007 = vmatpush1.bf16.msra.mxu0 %v734
        %1008 = vmatprep.subr.bf16.mxu0 0
        %1009 = vmatpush1.bf16.msra.mxu0 %v735
        %1010 = vmatprep.subr.bf16.mxu0 0
        %1011 = vmatpush1.bf16.msra.mxu0 0
        %1012 = vmatprep.subr.bf16.mxu0 0
        %1013 = vmatpush1.bf16.msra.mxu0 0
        %1014 = vmatprep.subr.bf16.mxu0 0
        %1015 = vmatpush1.bf16.msra.mxu0 0
        %1016 = vmatprep.subr.bf16.mxu0 0
        %1017 = vmatpush1.bf16.msra.mxu0 0
        %1018 = vmatprep.subr.bf16.mxu0 0
        %1019 = vmatpush1.bf16.msra.mxu0 0
        %1020 = vmatprep.subr.bf16.mxu0 0
        %1021 = vmatpush1.bf16.msra.mxu0 0
        %1022 = vmatprep.subr.bf16.mxu0 0
        %1023 = vmatpush1.bf16.msra.mxu0 0
        %1024 = vmatprep.subr.bf16.mxu0 0
        %1025 = vmatpush1.bf16.msra.mxu0 0
        %1026 = vmatprep.mubr.bf16.mxu0 0
        %1027 = vmatmul.mubr.bf16.gmra.mrb[0].mxu0 %v993
        %v1028 = vpop.f32.mrb[0].mxu0
        %v1029 = vadd.f32 0.0, %v1028
        %v1030 = vpop.f32.mrb[0].mxu0
        %v1031 = vpop.f32.mrb[0].mxu0
        %v1032 = vadd.f32 0.0, %v1031
        %v1033 = vpop.f32.mrb[0].mxu0
        %1034 = vdwg.mxu0
        %v1035 = vmul.f32 %v985, %v985
        %v1036 = vmul.f32 %v988, %v988
        %v1037 = vsub.f32 %v1029, %v1035
        %v1038 = vsub.f32 %v1032, %v1036
        %v1039 = vmax.f32 %v1037, 0.0
        %v1040 = vmax.f32 %v1038, 0.0
        %v1041 = vsub.f32 %v677, %v985
        %v1042 = vsub.f32 %v678, %v988
        %v1043 = vadd.f32 %v1039, 1e-05
        %v1044 = vadd.f32 %v1040, 1e-05
        %v1045 = vrsqrt.pop %v1043
        %v1046 = vrsqrt.pop %v1044
        %v1047 = vmul.f32 %v1041, %v1045
        %v1048 = vmul.f32 %v1042, %v1046
        %v1049 = vpack.c.bf16 %v1048, %v1047
        %v1050 = vld [vmem:[%s7] sm:$0xf]
        %v1051 = vld [vmem:[%s7 + $0x4] sm:$0xf]
        %v1052 = vld [vmem:[%s7 + $0x8] sm:$0xf]
        %v1053 = vld [vmem:[%s7 + $0xc] sm:$0xf]
        %v1054 = vld [vmem:[%s7 + $0x10] sm:$0xf]
        %v1055 = vld [vmem:[%s7 + $0x14] sm:$0xf]
        %v1056 = vld [vmem:[%s7 + $0x18] sm:$0xf]
        %v1057 = vld [vmem:[%s7 + $0x1c] sm:$0xf]
        %v1058 = vld [vmem:[%s7 + $0x20] sm:$0xf]
        %v1059 = vld [vmem:[%s7 + $0x24] sm:$0xf]
        %v1060 = vld [vmem:[%s7 + $0x28] sm:$0xf]
        %v1061 = vld [vmem:[%s7 + $0x2c] sm:$0xf]
        %v1062 = vld [vmem:[%s7 + $0x30] sm:$0xf]
        %v1063 = vld [vmem:[%s7 + $0x34] sm:$0xf]
        %v1064 = vld [vmem:[%s7 + $0x38] sm:$0xf]
        %v1065 = vld [vmem:[%s7 + $0x3c] sm:$0xf]
        %v1082 = vunpack.c.l.b16 %v1050
        %v1083 = vunpack.c.l.b16 %v1051
        %v1084 = vunpack.c.l.b16 %v1052
        %v1085 = vunpack.c.l.b16 %v1053
        %v1086 = vunpack.c.l.b16 %v1054
        %v1087 = vunpack.c.l.b16 %v1055
        %v1088 = vunpack.c.l.b16 %v1056
        %v1089 = vunpack.c.l.b16 %v1057
        %v1090 = vunpack.c.l.b16 %v1058
        %v1091 = vunpack.c.l.b16 %v1059
        %v1092 = vunpack.c.l.b16 %v1060
        %v1093 = vunpack.c.l.b16 %v1061
        %v1094 = vunpack.c.l.b16 %v1062
        %v1095 = vunpack.c.l.b16 %v1063
        %v1096 = vunpack.c.l.b16 %v1064
        %v1097 = vunpack.c.l.b16 %v1065
        %v1098 = vpack.c.b16 %v1083, %v1082
        %v1099 = vpack.c.b16 %v1085, %v1084
        %v1100 = vpack.c.b16 %v1087, %v1086
        %v1101 = vpack.c.b16 %v1089, %v1088
        %v1102 = vpack.c.b16 %v1091, %v1090
        %v1103 = vpack.c.b16 %v1093, %v1092
        %v1104 = vpack.c.b16 %v1095, %v1094
        %v1105 = vpack.c.b16 %v1097, %v1096
        %1114 = vmatprep.subr.bf16.mxu0 0
        %1115 = vmatpush1.bf16.msra.mxu0 %v1098
        %1116 = vmatprep.subr.bf16.mxu0 0
        %1117 = vmatpush1.bf16.msra.mxu0 %v1099
        %1118 = vmatprep.subr.bf16.mxu0 0
        %1119 = vmatpush1.bf16.msra.mxu0 %v1100
        %1120 = vmatprep.subr.bf16.mxu0 0
        %1121 = vmatpush1.bf16.msra.mxu0 %v1101
        %1122 = vmatprep.subr.bf16.mxu0 0
        %1123 = vmatpush1.bf16.msra.mxu0 %v1102
        %1124 = vmatprep.subr.bf16.mxu0 0
        %1125 = vmatpush1.bf16.msra.mxu0 %v1103
        %1126 = vmatprep.subr.bf16.mxu0 0
        %1127 = vmatpush1.bf16.msra.mxu0 %v1104
        %1128 = vmatprep.subr.bf16.mxu0 0
        %1129 = vmatpush1.bf16.msra.mxu0 %v1105
        %1130 = vmatprep.subr.bf16.mxu0 0
        %1131 = vmatpush1.bf16.msra.mxu0 0
        %1132 = vmatprep.subr.bf16.mxu0 0
        %1133 = vmatpush1.bf16.msra.mxu0 0
        %1134 = vmatprep.subr.bf16.mxu0 0
        %1135 = vmatpush1.bf16.msra.mxu0 0
        %1136 = vmatprep.subr.bf16.mxu0 0
        %1137 = vmatpush1.bf16.msra.mxu0 0
        %1138 = vmatprep.subr.bf16.mxu0 0
        %1139 = vmatpush1.bf16.msra.mxu0 0
        %1140 = vmatprep.subr.bf16.mxu0 0
        %1141 = vmatpush1.bf16.msra.mxu0 0
        %1142 = vmatprep.subr.bf16.mxu0 0
        %1143 = vmatpush1.bf16.msra.mxu0 0
        %1144 = vmatprep.subr.bf16.mxu0 0
        %1145 = vmatpush1.bf16.msra.mxu0 0
        %1146 = vmatprep.mubr.bf16.mxu0 0
        %1147 = vmatmul.mubr.bf16.gmra.mrb[0].mxu0 %v1049
        %v1148 = vpop.f32.mrb[0].mxu0
        %v1149 = vadd.f32 0.0, %v1148
        %v1150 = vpop.f32.mrb[0].mxu0
        %v1151 = vpop.f32.mrb[0].mxu0
        %v1152 = vadd.f32 0.0, %v1151
        %v1153 = vpop.f32.mrb[0].mxu0
        %1154 = vdwg.mxu0
        %v1155 = vpack.c.bf16 %v946, %v943
        %v1156 = vpack.c.bf16 %v1152, %v1149
        %v1157 = vpack.c.bf16 %v652, %v649
        %vm1158 = vcmask 261120
        %v1160 = vsel %vm1158, %v1155, 0
        %v1163 = vsel %vm1158, %v1156, 0
        %1165 = vmatprep.subr.bf16.mxu0 0
        %1166 = vmatpush1.bf16.xpose.msra.mxu0 %v1163
        %1167 = vmatprep.subr.bf16.mxu0 0
        %1168 = vmatpush1.bf16.xpose.msra.mxu0 0
        %1169 = vmatprep.subr.bf16.mxu0 0
        %1170 = vmatpush1.bf16.xpose.msra.mxu0 0
        %1171 = vmatprep.subr.bf16.mxu0 0
        %1172 = vmatpush1.bf16.xpose.msra.mxu0 0
        %1173 = vmatprep.subr.bf16.mxu0 0
        %1174 = vmatpush1.bf16.xpose.msra.mxu0 0
        %1175 = vmatprep.subr.bf16.mxu0 0
        %1176 = vmatpush1.bf16.xpose.msra.mxu0 0
        %1177 = vmatprep.subr.bf16.mxu0 0
        %1178 = vmatpush1.bf16.xpose.msra.mxu0 0
        %1179 = vmatprep.subr.bf16.mxu0 0
        %1180 = vmatpush1.bf16.xpose.msra.mxu0 0
        %1181 = vmatprep.subr.bf16.mxu0 0
        %1182 = vmatpush1.bf16.xpose.msra.mxu0 0
        %1183 = vmatprep.subr.bf16.mxu0 0
        %1184 = vmatpush1.bf16.xpose.msra.mxu0 0
        %1185 = vmatprep.subr.bf16.mxu0 0
        %1186 = vmatpush1.bf16.xpose.msra.mxu0 0
        %1187 = vmatprep.subr.bf16.mxu0 0
        %1188 = vmatpush1.bf16.xpose.msra.mxu0 0
        %1189 = vmatprep.subr.bf16.mxu0 0
        %1190 = vmatpush1.bf16.xpose.msra.mxu0 0
        %1191 = vmatprep.subr.bf16.mxu0 0
        %1192 = vmatpush1.bf16.xpose.msra.mxu0 0
        %1193 = vmatprep.subr.bf16.mxu0 0
        %1194 = vmatpush1.bf16.xpose.msra.mxu0 0
        %1195 = vmatprep.subr.bf16.mxu0 0
        %1196 = vmatpush1.bf16.xpose.msra.mxu0 0
        %1197 = vmatprep.mubr.bf16.mxu0 0
        %1198 = vmatmul.mubr.bf16.gmra.mrb[0].mxu0 %v1160
        %v1199 = vpop.f32.mrb[0].mxu0
        %v1200 = vadd.f32 0.0, %v1199
        %v1201 = vpop.f32.mrb[0].mxu0
        %v1202 = vpop.f32.mrb[0].mxu0
        %v1203 = vadd.f32 0.0, %v1202
        %v1204 = vpop.f32.mrb[0].mxu0
        %1205 = vdwg.mxu0
        %vm1206 = vcmask 130048
        %v1207 = vsel %vm1206, %v1200, -inf
        %1208 = vmax.xlane.f32.xlu0 %v1207
        %v1209 = vpop.xlane.xlu0 %1208
        %v1210 = vsel %vm1206, %v1203, -inf
        %1211 = vmax.xlane.f32.xlu0 %v1210
        %v1212 = vpop.xlane.xlu0 %1211
        %v1213 = vsub.f32 %v1200, %v1209
        %v1214 = vsub.f32 %v1203, %v1212
        %v1215 = vmul.f32 %v1213, 1.442695
        %v1216 = vpow.pop %v1215
        %v1217 = vmul.f32 %v1214, 1.442695
        %v1218 = vpow.pop %v1217
        %v1219 = vsel %vm1206, %v1216, 0.0
        %1220 = vadd.xlane.f32.xlu0 %v1219
        %v1221 = vpop.xlane.xlu0 %1220
        %v1222 = vsel %vm1206, %v1218, 0.0
        %1223 = vadd.xlane.f32.xlu0 %v1222
        %v1224 = vpop.xlane.xlu0 %1223
        %v1225 = vpack.c.bf16 %v1218, %v1216
        %v1227 = vsel %vm1206, %v1225, 0
        %1229 = vmatprep.subr.bf16.mxu0 0
        %1230 = vmatpush1.bf16.msra.mxu0 %v1157
        %1231 = vmatprep.subr.bf16.mxu0 0
        %1232 = vmatpush1.bf16.msra.mxu0 0
        %1233 = vmatprep.subr.bf16.mxu0 0
        %1234 = vmatpush1.bf16.msra.mxu0 0
        %1235 = vmatprep.subr.bf16.mxu0 0
        %1236 = vmatpush1.bf16.msra.mxu0 0
        %1237 = vmatprep.subr.bf16.mxu0 0
        %1238 = vmatpush1.bf16.msra.mxu0 0
        %1239 = vmatprep.subr.bf16.mxu0 0
        %1240 = vmatpush1.bf16.msra.mxu0 0
        %1241 = vmatprep.subr.bf16.mxu0 0
        %1242 = vmatpush1.bf16.msra.mxu0 0
        %1243 = vmatprep.subr.bf16.mxu0 0
        %1244 = vmatpush1.bf16.msra.mxu0 0
        %1245 = vmatprep.subr.bf16.mxu0 0
        %1246 = vmatpush1.bf16.msra.mxu0 0
        %1247 = vmatprep.subr.bf16.mxu0 0
        %1248 = vmatpush1.bf16.msra.mxu0 0
        %1249 = vmatprep.subr.bf16.mxu0 0
        %1250 = vmatpush1.bf16.msra.mxu0 0
        %1251 = vmatprep.subr.bf16.mxu0 0
        %1252 = vmatpush1.bf16.msra.mxu0 0
        %1253 = vmatprep.subr.bf16.mxu0 0
        %1254 = vmatpush1.bf16.msra.mxu0 0
        %1255 = vmatprep.subr.bf16.mxu0 0
        %1256 = vmatpush1.bf16.msra.mxu0 0
        %1257 = vmatprep.subr.bf16.mxu0 0
        %1258 = vmatpush1.bf16.msra.mxu0 0
        %1259 = vmatprep.subr.bf16.mxu0 0
        %1260 = vmatpush1.bf16.msra.mxu0 0
        %1261 = vmatprep.mubr.bf16.mxu0 0
        %1262 = vmatmul.mubr.bf16.gmra.mrb[0].mxu0 %v1227
        %v1263 = vpop.f32.mrb[0].mxu0
        %v1264 = vadd.f32 0.0, %v1263
        %v1265 = vpop.f32.mrb[0].mxu0
        %v1266 = vpop.f32.mrb[0].mxu0
        %v1267 = vadd.f32 0.0, %v1266
        %v1268 = vpop.f32.mrb[0].mxu0
        %1269 = vdwg.mxu0
        %v1270 = vrcp.pop %v1221
        %v1271 = vrcp.pop %v1224
        %v1272 = vmul.f32 %v1264, %v1270
        %v1273 = vmul.f32 %v1267, %v1271
        %1275 = vrot.lane.b32.xlu0 %v1155, 96
        %v1276 = vpop.permute.xlu0 %1275
        %1278 = vrot.lane.b32.xlu0 %v1156, 96
        %v1279 = vpop.permute.xlu0 %1278
        %v1281 = vsel %vm1158, %v1276, 0
        %v1284 = vsel %vm1158, %v1279, 0
        %1286 = vmatprep.subr.bf16.mxu0 0
        %1287 = vmatpush1.bf16.xpose.msra.mxu0 %v1284
        %1288 = vmatprep.subr.bf16.mxu0 0
        %1289 = vmatpush1.bf16.xpose.msra.mxu0 0
        %1290 = vmatprep.subr.bf16.mxu0 0
        %1291 = vmatpush1.bf16.xpose.msra.mxu0 0
        %1292 = vmatprep.subr.bf16.mxu0 0
        %1293 = vmatpush1.bf16.xpose.msra.mxu0 0
        %1294 = vmatprep.subr.bf16.mxu0 0
        %1295 = vmatpush1.bf16.xpose.msra.mxu0 0
        %1296 = vmatprep.subr.bf16.mxu0 0
        %1297 = vmatpush1.bf16.xpose.msra.mxu0 0
        %1298 = vmatprep.subr.bf16.mxu0 0
        %1299 = vmatpush1.bf16.xpose.msra.mxu0 0
        %1300 = vmatprep.subr.bf16.mxu0 0
        %1301 = vmatpush1.bf16.xpose.msra.mxu0 0
        %1302 = vmatprep.subr.bf16.mxu0 0
        %1303 = vmatpush1.bf16.xpose.msra.mxu0 0
        %1304 = vmatprep.subr.bf16.mxu0 0
        %1305 = vmatpush1.bf16.xpose.msra.mxu0 0
        %1306 = vmatprep.subr.bf16.mxu0 0
        %1307 = vmatpush1.bf16.xpose.msra.mxu0 0
        %1308 = vmatprep.subr.bf16.mxu0 0
        %1309 = vmatpush1.bf16.xpose.msra.mxu0 0
        %1310 = vmatprep.subr.bf16.mxu0 0
        %1311 = vmatpush1.bf16.xpose.msra.mxu0 0
        %1312 = vmatprep.subr.bf16.mxu0 0
        %1313 = vmatpush1.bf16.xpose.msra.mxu0 0
        %1314 = vmatprep.subr.bf16.mxu0 0
        %1315 = vmatpush1.bf16.xpose.msra.mxu0 0
        %1316 = vmatprep.subr.bf16.mxu0 0
        %1317 = vmatpush1.bf16.xpose.msra.mxu0 0
        %1318 = vmatprep.mubr.bf16.mxu0 0
        %1319 = vmatmul.mubr.bf16.gmra.mrb[0].mxu0 %v1281
        %v1320 = vpop.f32.mrb[0].mxu0
        %v1321 = vadd.f32 0.0, %v1320
        %v1322 = vpop.f32.mrb[0].mxu0
        %v1323 = vpop.f32.mrb[0].mxu0
        %v1324 = vadd.f32 0.0, %v1323
        %v1325 = vpop.f32.mrb[0].mxu0
        %1326 = vdwg.mxu0
        %v1327 = vsel %vm1206, %v1321, -inf
        %1328 = vmax.xlane.f32.xlu0 %v1327
        %v1329 = vpop.xlane.xlu0 %1328
        %v1330 = vsel %vm1206, %v1324, -inf
        %1331 = vmax.xlane.f32.xlu0 %v1330
        %v1332 = vpop.xlane.xlu0 %1331
        %v1333 = vsub.f32 %v1321, %v1329
        %v1334 = vsub.f32 %v1324, %v1332
        %v1335 = vmul.f32 %v1333, 1.442695
        %v1336 = vpow.pop %v1335
        %v1337 = vmul.f32 %v1334, 1.442695
        %v1338 = vpow.pop %v1337
        %v1339 = vsel %vm1206, %v1336, 0.0
        %1340 = vadd.xlane.f32.xlu0 %v1339
        %v1341 = vpop.xlane.xlu0 %1340
        %v1342 = vsel %vm1206, %v1338, 0.0
        %1343 = vadd.xlane.f32.xlu0 %v1342
        %v1344 = vpop.xlane.xlu0 %1343
        %v1345 = vpack.c.bf16 %v1338, %v1336
        %1347 = vrot.lane.b32.xlu0 %v1157, 96
        %v1348 = vpop.permute.xlu0 %1347
        %v1351 = vsel %vm1206, %v1345, 0
        %1353 = vmatprep.subr.bf16.mxu0 0
        %1354 = vmatpush1.bf16.msra.mxu0 %v1348
        %1355 = vmatprep.subr.bf16.mxu0 0
        %1356 = vmatpush1.bf16.msra.mxu0 0
        %1357 = vmatprep.subr.bf16.mxu0 0
        %1358 = vmatpush1.bf16.msra.mxu0 0
        %1359 = vmatprep.subr.bf16.mxu0 0
        %1360 = vmatpush1.bf16.msra.mxu0 0
        %1361 = vmatprep.subr.bf16.mxu0 0
        %1362 = vmatpush1.bf16.msra.mxu0 0
        %1363 = vmatprep.subr.bf16.mxu0 0
        %1364 = vmatpush1.bf16.msra.mxu0 0
        %1365 = vmatprep.subr.bf16.mxu0 0
        %1366 = vmatpush1.bf16.msra.mxu0 0
        %1367 = vmatprep.subr.bf16.mxu0 0
        %1368 = vmatpush1.bf16.msra.mxu0 0
        %1369 = vmatprep.subr.bf16.mxu0 0
        %1370 = vmatpush1.bf16.msra.mxu0 0
        %1371 = vmatprep.subr.bf16.mxu0 0
        %1372 = vmatpush1.bf16.msra.mxu0 0
        %1373 = vmatprep.subr.bf16.mxu0 0
        %1374 = vmatpush1.bf16.msra.mxu0 0
        %1375 = vmatprep.subr.bf16.mxu0 0
        %1376 = vmatpush1.bf16.msra.mxu0 0
        %1377 = vmatprep.subr.bf16.mxu0 0
        %1378 = vmatpush1.bf16.msra.mxu0 0
        %1379 = vmatprep.subr.bf16.mxu0 0
        %1380 = vmatpush1.bf16.msra.mxu0 0
        %1381 = vmatprep.subr.bf16.mxu0 0
        %1382 = vmatpush1.bf16.msra.mxu0 0
        %1383 = vmatprep.subr.bf16.mxu0 0
        %1384 = vmatpush1.bf16.msra.mxu0 0
        %1385 = vmatprep.mubr.bf16.mxu0 0
        %1386 = vmatmul.mubr.bf16.gmra.mrb[0].mxu0 %v1351
        %v1387 = vpop.f32.mrb[0].mxu0
        %v1388 = vadd.f32 0.0, %v1387
        %v1389 = vpop.f32.mrb[0].mxu0
        %v1390 = vpop.f32.mrb[0].mxu0
        %v1391 = vadd.f32 0.0, %v1390
        %v1392 = vpop.f32.mrb[0].mxu0
        %1393 = vdwg.mxu0
        %v1394 = vrcp.pop %v1341
        %v1395 = vrcp.pop %v1344
        %v1396 = vmul.f32 %v1388, %v1394
        %v1397 = vmul.f32 %v1391, %v1395
        %1398 = vrot.lane.b32.xlu0 %v1155, 64
        %v1399 = vpop.permute.xlu0 %1398
        %1400 = vrot.lane.b32.xlu0 %v1156, 64
        %v1401 = vpop.permute.xlu0 %1400
        %v1403 = vsel %vm1158, %v1399, 0
        %v1406 = vsel %vm1158, %v1401, 0
        %1408 = vmatprep.subr.bf16.mxu0 0
        %1409 = vmatpush1.bf16.xpose.msra.mxu0 %v1406
        %1410 = vmatprep.subr.bf16.mxu0 0
        %1411 = vmatpush1.bf16.xpose.msra.mxu0 0
        %1412 = vmatprep.subr.bf16.mxu0 0
        %1413 = vmatpush1.bf16.xpose.msra.mxu0 0
        %1414 = vmatprep.subr.bf16.mxu0 0
        %1415 = vmatpush1.bf16.xpose.msra.mxu0 0
        %1416 = vmatprep.subr.bf16.mxu0 0
        %1417 = vmatpush1.bf16.xpose.msra.mxu0 0
        %1418 = vmatprep.subr.bf16.mxu0 0
        %1419 = vmatpush1.bf16.xpose.msra.mxu0 0
        %1420 = vmatprep.subr.bf16.mxu0 0
        %1421 = vmatpush1.bf16.xpose.msra.mxu0 0
        %1422 = vmatprep.subr.bf16.mxu0 0
        %1423 = vmatpush1.bf16.xpose.msra.mxu0 0
        %1424 = vmatprep.subr.bf16.mxu0 0
        %1425 = vmatpush1.bf16.xpose.msra.mxu0 0
        %1426 = vmatprep.subr.bf16.mxu0 0
        %1427 = vmatpush1.bf16.xpose.msra.mxu0 0
        %1428 = vmatprep.subr.bf16.mxu0 0
        %1429 = vmatpush1.bf16.xpose.msra.mxu0 0
        %1430 = vmatprep.subr.bf16.mxu0 0
        %1431 = vmatpush1.bf16.xpose.msra.mxu0 0
        %1432 = vmatprep.subr.bf16.mxu0 0
        %1433 = vmatpush1.bf16.xpose.msra.mxu0 0
        %1434 = vmatprep.subr.bf16.mxu0 0
        %1435 = vmatpush1.bf16.xpose.msra.mxu0 0
        %1436 = vmatprep.subr.bf16.mxu0 0
        %1437 = vmatpush1.bf16.xpose.msra.mxu0 0
        %1438 = vmatprep.subr.bf16.mxu0 0
        %1439 = vmatpush1.bf16.xpose.msra.mxu0 0
        %1440 = vmatprep.mubr.bf16.mxu0 0
        %1441 = vmatmul.mubr.bf16.gmra.mrb[0].mxu0 %v1403
        %v1442 = vpop.f32.mrb[0].mxu0
        %v1443 = vadd.f32 0.0, %v1442
        %v1444 = vpop.f32.mrb[0].mxu0
        %v1445 = vpop.f32.mrb[0].mxu0
        %v1446 = vadd.f32 0.0, %v1445
        %v1447 = vpop.f32.mrb[0].mxu0
        %1448 = vdwg.mxu0
        %v1449 = vsel %vm1206, %v1443, -inf
        %1450 = vmax.xlane.f32.xlu0 %v1449
        %v1451 = vpop.xlane.xlu0 %1450
        %v1452 = vsel %vm1206, %v1446, -inf
        %1453 = vmax.xlane.f32.xlu0 %v1452
        %v1454 = vpop.xlane.xlu0 %1453
        %v1455 = vsub.f32 %v1443, %v1451
        %v1456 = vsub.f32 %v1446, %v1454
        %v1457 = vmul.f32 %v1455, 1.442695
        %v1458 = vpow.pop %v1457
        %v1459 = vmul.f32 %v1456, 1.442695
        %v1460 = vpow.pop %v1459
        %v1461 = vsel %vm1206, %v1458, 0.0
        %1462 = vadd.xlane.f32.xlu0 %v1461
        %v1463 = vpop.xlane.xlu0 %1462
        %v1464 = vsel %vm1206, %v1460, 0.0
        %1465 = vadd.xlane.f32.xlu0 %v1464
        %v1466 = vpop.xlane.xlu0 %1465
        %v1467 = vpack.c.bf16 %v1460, %v1458
        %1468 = vrot.lane.b32.xlu0 %v1157, 64
        %v1469 = vpop.permute.xlu0 %1468
        %v1472 = vsel %vm1206, %v1467, 0
        %1474 = vmatprep.subr.bf16.mxu0 0
        %1475 = vmatpush1.bf16.msra.mxu0 %v1469
        %1476 = vmatprep.subr.bf16.mxu0 0
        %1477 = vmatpush1.bf16.msra.mxu0 0
        %1478 = vmatprep.subr.bf16.mxu0 0
        %1479 = vmatpush1.bf16.msra.mxu0 0
        %1480 = vmatprep.subr.bf16.mxu0 0
        %1481 = vmatpush1.bf16.msra.mxu0 0
        %1482 = vmatprep.subr.bf16.mxu0 0
        %1483 = vmatpush1.bf16.msra.mxu0 0
        %1484 = vmatprep.subr.bf16.mxu0 0
        %1485 = vmatpush1.bf16.msra.mxu0 0
        %1486 = vmatprep.subr.bf16.mxu0 0
        %1487 = vmatpush1.bf16.msra.mxu0 0
        %1488 = vmatprep.subr.bf16.mxu0 0
        %1489 = vmatpush1.bf16.msra.mxu0 0
        %1490 = vmatprep.subr.bf16.mxu0 0
        %1491 = vmatpush1.bf16.msra.mxu0 0
        %1492 = vmatprep.subr.bf16.mxu0 0
        %1493 = vmatpush1.bf16.msra.mxu0 0
        %1494 = vmatprep.subr.bf16.mxu0 0
        %1495 = vmatpush1.bf16.msra.mxu0 0
        %1496 = vmatprep.subr.bf16.mxu0 0
        %1497 = vmatpush1.bf16.msra.mxu0 0
        %1498 = vmatprep.subr.bf16.mxu0 0
        %1499 = vmatpush1.bf16.msra.mxu0 0
        %1500 = vmatprep.subr.bf16.mxu0 0
        %1501 = vmatpush1.bf16.msra.mxu0 0
        %1502 = vmatprep.subr.bf16.mxu0 0
        %1503 = vmatpush1.bf16.msra.mxu0 0
        %1504 = vmatprep.subr.bf16.mxu0 0
        %1505 = vmatpush1.bf16.msra.mxu0 0
        %1506 = vmatprep.mubr.bf16.mxu0 0
        %1507 = vmatmul.mubr.bf16.gmra.mrb[0].mxu0 %v1472
        %v1508 = vpop.f32.mrb[0].mxu0
        %v1509 = vadd.f32 0.0, %v1508
        %v1510 = vpop.f32.mrb[0].mxu0
        %v1511 = vpop.f32.mrb[0].mxu0
        %v1512 = vadd.f32 0.0, %v1511
        %v1513 = vpop.f32.mrb[0].mxu0
        %1514 = vdwg.mxu0
        %v1515 = vrcp.pop %v1463
        %v1516 = vrcp.pop %v1466
        %v1517 = vmul.f32 %v1509, %v1515
        %v1518 = vmul.f32 %v1512, %v1516
        %1519 = vrot.lane.b32.xlu0 %v1155, 32
        %v1520 = vpop.permute.xlu0 %1519
        %1521 = vrot.lane.b32.xlu0 %v1156, 32
        %v1522 = vpop.permute.xlu0 %1521
        %v1524 = vsel %vm1158, %v1520, 0
        %v1527 = vsel %vm1158, %v1522, 0
        %1529 = vmatprep.subr.bf16.mxu0 0
        %1530 = vmatpush1.bf16.xpose.msra.mxu0 %v1527
        %1531 = vmatprep.subr.bf16.mxu0 0
        %1532 = vmatpush1.bf16.xpose.msra.mxu0 0
        %1533 = vmatprep.subr.bf16.mxu0 0
        %1534 = vmatpush1.bf16.xpose.msra.mxu0 0
        %1535 = vmatprep.subr.bf16.mxu0 0
        %1536 = vmatpush1.bf16.xpose.msra.mxu0 0
        %1537 = vmatprep.subr.bf16.mxu0 0
        %1538 = vmatpush1.bf16.xpose.msra.mxu0 0
        %1539 = vmatprep.subr.bf16.mxu0 0
        %1540 = vmatpush1.bf16.xpose.msra.mxu0 0
        %1541 = vmatprep.subr.bf16.mxu0 0
        %1542 = vmatpush1.bf16.xpose.msra.mxu0 0
        %1543 = vmatprep.subr.bf16.mxu0 0
        %1544 = vmatpush1.bf16.xpose.msra.mxu0 0
        %1545 = vmatprep.subr.bf16.mxu0 0
        %1546 = vmatpush1.bf16.xpose.msra.mxu0 0
        %1547 = vmatprep.subr.bf16.mxu0 0
        %1548 = vmatpush1.bf16.xpose.msra.mxu0 0
        %1549 = vmatprep.subr.bf16.mxu0 0
        %1550 = vmatpush1.bf16.xpose.msra.mxu0 0
        %1551 = vmatprep.subr.bf16.mxu0 0
        %1552 = vmatpush1.bf16.xpose.msra.mxu0 0
        %1553 = vmatprep.subr.bf16.mxu0 0
        %1554 = vmatpush1.bf16.xpose.msra.mxu0 0
        %1555 = vmatprep.subr.bf16.mxu0 0
        %1556 = vmatpush1.bf16.xpose.msra.mxu0 0
        %1557 = vmatprep.subr.bf16.mxu0 0
        %1558 = vmatpush1.bf16.xpose.msra.mxu0 0
        %1559 = vmatprep.subr.bf16.mxu0 0
        %1560 = vmatpush1.bf16.xpose.msra.mxu0 0
        %1561 = vmatprep.mubr.bf16.mxu0 0
        %1562 = vmatmul.mubr.bf16.gmra.mrb[0].mxu0 %v1524
        %v1563 = vpop.f32.mrb[0].mxu0
        %v1564 = vadd.f32 0.0, %v1563
        %v1565 = vpop.f32.mrb[0].mxu0
        %v1566 = vpop.f32.mrb[0].mxu0
        %v1567 = vadd.f32 0.0, %v1566
        %v1568 = vpop.f32.mrb[0].mxu0
        %1569 = vdwg.mxu0
        %v1570 = vsel %vm1206, %v1564, -inf
        %1571 = vmax.xlane.f32.xlu0 %v1570
        %v1572 = vpop.xlane.xlu0 %1571
        %v1573 = vsel %vm1206, %v1567, -inf
        %1574 = vmax.xlane.f32.xlu0 %v1573
        %v1575 = vpop.xlane.xlu0 %1574
        %v1576 = vsub.f32 %v1564, %v1572
        %v1577 = vsub.f32 %v1567, %v1575
        %v1578 = vmul.f32 %v1576, 1.442695
        %v1579 = vpow.pop %v1578
        %v1580 = vmul.f32 %v1577, 1.442695
        %v1581 = vpow.pop %v1580
        %v1582 = vsel %vm1206, %v1579, 0.0
        %1583 = vadd.xlane.f32.xlu0 %v1582
        %v1584 = vpop.xlane.xlu0 %1583
        %v1585 = vsel %vm1206, %v1581, 0.0
        %1586 = vadd.xlane.f32.xlu0 %v1585
        %v1587 = vpop.xlane.xlu0 %1586
        %v1588 = vpack.c.bf16 %v1581, %v1579
        %1589 = vrot.lane.b32.xlu0 %v1157, 32
        %v1590 = vpop.permute.xlu0 %1589
        %v1593 = vsel %vm1206, %v1588, 0
        %1595 = vmatprep.subr.bf16.mxu0 0
        %1596 = vmatpush1.bf16.msra.mxu0 %v1590
        %1597 = vmatprep.subr.bf16.mxu0 0
        %1598 = vmatpush1.bf16.msra.mxu0 0
        %1599 = vmatprep.subr.bf16.mxu0 0
        %1600 = vmatpush1.bf16.msra.mxu0 0
        %1601 = vmatprep.subr.bf16.mxu0 0
        %1602 = vmatpush1.bf16.msra.mxu0 0
        %1603 = vmatprep.subr.bf16.mxu0 0
        %1604 = vmatpush1.bf16.msra.mxu0 0
        %1605 = vmatprep.subr.bf16.mxu0 0
        %1606 = vmatpush1.bf16.msra.mxu0 0
        %1607 = vmatprep.subr.bf16.mxu0 0
        %1608 = vmatpush1.bf16.msra.mxu0 0
        %1609 = vmatprep.subr.bf16.mxu0 0
        %1610 = vmatpush1.bf16.msra.mxu0 0
        %1611 = vmatprep.subr.bf16.mxu0 0
        %1612 = vmatpush1.bf16.msra.mxu0 0
        %1613 = vmatprep.subr.bf16.mxu0 0
        %1614 = vmatpush1.bf16.msra.mxu0 0
        %1615 = vmatprep.subr.bf16.mxu0 0
        %1616 = vmatpush1.bf16.msra.mxu0 0
        %1617 = vmatprep.subr.bf16.mxu0 0
        %1618 = vmatpush1.bf16.msra.mxu0 0
        %1619 = vmatprep.subr.bf16.mxu0 0
        %1620 = vmatpush1.bf16.msra.mxu0 0
        %1621 = vmatprep.subr.bf16.mxu0 0
        %1622 = vmatpush1.bf16.msra.mxu0 0
        %1623 = vmatprep.subr.bf16.mxu0 0
        %1624 = vmatpush1.bf16.msra.mxu0 0
        %1625 = vmatprep.subr.bf16.mxu0 0
        %1626 = vmatpush1.bf16.msra.mxu0 0
        %1627 = vmatprep.mubr.bf16.mxu0 0
        %1628 = vmatmul.mubr.bf16.gmra.mrb[0].mxu0 %v1593
        %v1629 = vpop.f32.mrb[0].mxu0
        %v1630 = vadd.f32 0.0, %v1629
        %v1631 = vpop.f32.mrb[0].mxu0
        %v1632 = vpop.f32.mrb[0].mxu0
        %v1633 = vadd.f32 0.0, %v1632
        %v1634 = vpop.f32.mrb[0].mxu0
        %1635 = vdwg.mxu0
        %v1636 = vrcp.pop %v1584
        %v1637 = vrcp.pop %v1587
        %v1638 = vmul.f32 %v1630, %v1636
        %v1639 = vmul.f32 %v1633, %v1637
        %1642 = vrot.lane.b32.xlu0 %v1396, 32
        %v1643 = vpop.permute.xlu0 %1642
        %1644 = vrot.lane.b32.xlu0 %v1397, 32
        %v1645 = vpop.permute.xlu0 %1644
        %1650 = vrot.lane.b32.xlu0 %v1517, 64
        %v1651 = vpop.permute.xlu0 %1650
        %1652 = vrot.lane.b32.xlu0 %v1518, 64
        %v1653 = vpop.permute.xlu0 %1652
        %1658 = vrot.lane.b32.xlu0 %v1638, 96
        %v1659 = vpop.permute.xlu0 %1658
        %1660 = vrot.lane.b32.xlu0 %v1639, 96
        %v1661 = vpop.permute.xlu0 %1660
        %v1664 = vsel %vm1158, %v1272, %v1643
        %v1665 = vsel %vm1158, %v1273, %v1645
        %vm1666 = vcmask 523264
        %v1667 = vsel %vm1666, %v1664, %v1651
        %v1668 = vsel %vm1666, %v1665, %v1653
        %vm1669 = vcmask 785408
        %v1670 = vsel %vm1669, %v1667, %v1659
        %v1671 = vsel %vm1669, %v1668, %v1661
        %v1672 = vpack.c.bf16 %v1671, %v1670
        %v1673 = vld [vmem:[%s8] sm:$0xf]
        %v1674 = vld [vmem:[%s8 + $0x4] sm:$0xf]
        %v1675 = vld [vmem:[%s8 + $0x8] sm:$0xf]
        %v1676 = vld [vmem:[%s8 + $0xc] sm:$0xf]
        %v1677 = vld [vmem:[%s8 + $0x10] sm:$0xf]
        %v1678 = vld [vmem:[%s8 + $0x14] sm:$0xf]
        %v1679 = vld [vmem:[%s8 + $0x18] sm:$0xf]
        %v1680 = vld [vmem:[%s8 + $0x1c] sm:$0xf]
        %v1681 = vld [vmem:[%s8 + $0x20] sm:$0xf]
        %v1682 = vld [vmem:[%s8 + $0x24] sm:$0xf]
        %v1683 = vld [vmem:[%s8 + $0x28] sm:$0xf]
        %v1684 = vld [vmem:[%s8 + $0x2c] sm:$0xf]
        %v1685 = vld [vmem:[%s8 + $0x30] sm:$0xf]
        %v1686 = vld [vmem:[%s8 + $0x34] sm:$0xf]
        %v1687 = vld [vmem:[%s8 + $0x38] sm:$0xf]
        %v1688 = vld [vmem:[%s8 + $0x3c] sm:$0xf]
        %v1689 = vld [vmem:[%s9] sm:$0x1]
        %v1691 = vlaneseq
        %v1692 = vshrl.u32 %v1691, 7
        %v1693 = vsub.s32 0, %v1692
        %v1694 = vrot.slane %v1689, %v1693
        %v1712 = vunpack.c.l.b16 %v1673
        %v1713 = vunpack.c.l.b16 %v1674
        %v1714 = vunpack.c.l.b16 %v1675
        %v1715 = vunpack.c.l.b16 %v1676
        %v1716 = vunpack.c.l.b16 %v1677
        %v1717 = vunpack.c.l.b16 %v1678
        %v1718 = vunpack.c.l.b16 %v1679
        %v1719 = vunpack.c.l.b16 %v1680
        %v1720 = vunpack.c.l.b16 %v1681
        %v1721 = vunpack.c.l.b16 %v1682
        %v1722 = vunpack.c.l.b16 %v1683
        %v1723 = vunpack.c.l.b16 %v1684
        %v1724 = vunpack.c.l.b16 %v1685
        %v1725 = vunpack.c.l.b16 %v1686
        %v1726 = vunpack.c.l.b16 %v1687
        %v1727 = vunpack.c.l.b16 %v1688
        %v1728 = vpack.c.b16 %v1713, %v1712
        %v1729 = vpack.c.b16 %v1715, %v1714
        %v1730 = vpack.c.b16 %v1717, %v1716
        %v1731 = vpack.c.b16 %v1719, %v1718
        %v1732 = vpack.c.b16 %v1721, %v1720
        %v1733 = vpack.c.b16 %v1723, %v1722
        %v1734 = vpack.c.b16 %v1725, %v1724
        %v1735 = vpack.c.b16 %v1727, %v1726
        %1744 = vmatprep.subr.bf16.mxu0 0
        %1745 = vmatpush1.bf16.msra.mxu0 %v1728
        %1746 = vmatprep.subr.bf16.mxu0 0
        %1747 = vmatpush1.bf16.msra.mxu0 %v1729
        %1748 = vmatprep.subr.bf16.mxu0 0
        %1749 = vmatpush1.bf16.msra.mxu0 %v1730
        %1750 = vmatprep.subr.bf16.mxu0 0
        %1751 = vmatpush1.bf16.msra.mxu0 %v1731
        %1752 = vmatprep.subr.bf16.mxu0 0
        %1753 = vmatpush1.bf16.msra.mxu0 %v1732
        %1754 = vmatprep.subr.bf16.mxu0 0
        %1755 = vmatpush1.bf16.msra.mxu0 %v1733
        %1756 = vmatprep.subr.bf16.mxu0 0
        %1757 = vmatpush1.bf16.msra.mxu0 %v1734
        %1758 = vmatprep.subr.bf16.mxu0 0
        %1759 = vmatpush1.bf16.msra.mxu0 %v1735
        %1760 = vmatprep.subr.bf16.mxu0 0
        %1761 = vmatpush1.bf16.msra.mxu0 0
        %1762 = vmatprep.subr.bf16.mxu0 0
        %1763 = vmatpush1.bf16.msra.mxu0 0
        %1764 = vmatprep.subr.bf16.mxu0 0
        %1765 = vmatpush1.bf16.msra.mxu0 0
        %1766 = vmatprep.subr.bf16.mxu0 0
        %1767 = vmatpush1.bf16.msra.mxu0 0
        %1768 = vmatprep.subr.bf16.mxu0 0
        %1769 = vmatpush1.bf16.msra.mxu0 0
        %1770 = vmatprep.subr.bf16.mxu0 0
        %1771 = vmatpush1.bf16.msra.mxu0 0
        %1772 = vmatprep.subr.bf16.mxu0 0
        %1773 = vmatpush1.bf16.msra.mxu0 0
        %1774 = vmatprep.subr.bf16.mxu0 0
        %1775 = vmatpush1.bf16.msra.mxu0 0
        %1776 = vmatprep.mubr.bf16.mxu0 0
        %1777 = vmatmul.mubr.bf16.gmra.mrb[0].mxu0 %v1672
        %v1778 = vpop.f32.mrb[0].mxu0
        %v1779 = vadd.f32 %v1694, %v1778
        %v1780 = vpop.f32.mrb[0].mxu0
        %v1781 = vpop.f32.mrb[0].mxu0
        %v1782 = vadd.f32 %v1694, %v1781
        %v1783 = vpop.f32.mrb[0].mxu0
        %1784 = vdwg.mxu0
        %1785 = vst [vmem:[%s352] sm:$0xff] %v1779
        %1786 = vst [vmem:[%s352 + $0x8] sm:$0xff] %v1782
        %s1787 = sand.u32 %s247, 1
        %s1788 = scalar_lea.sflag [#allocation3], %s1787
        %s1789 = sand.u32 %s247, 1
        %s1790 = smul.addr %s1789, 16
        %s1791 = scalar_lea.vmem [#allocation2], %s1790
        // Predicated region
        $region61: #{attentionb_forward.1} parent=59 // pred_check
          %p1792 = pneg %p257
        $region62: #{attentionb_forward.1} parent=59 // pred_check_branch
          %1794 = sbr.rel (%p1792) target = $region64
        $region63: #{attentionb_forward.1} parent=59 // pred_region
          %s1796 = ssub.s32 256, 256
          %1797 = vsyncadd %s1788, %s1796
          %s1798 = smul.addr %s24, 2
          %s1799 = smul.addr %s1798, 128
          %s1800 = scalar_lea.hbm %s10, %s1799
          %s1801 = sshll.u32 %s1791, 4
          %s1802 = int_to_ptr.vmem [resolvable:$true] %s1801
          %1807 = dma.vmem_to_hbm [thread:$0]  %s1802, 256, %s1800, %s1788, 128, 128, 8
        $region64: #{attentionb_forward.1} parent=59 // pred_fallthru
          _
      $region60: #{attentionb_forward.1} parent=5 // pred_fallthru
        _
      %p1808 = scmp.le.s32.totalorder 2, %s19
      // Predicated region
      $region65: #{attentionb_forward.1} parent=5 // pred_check
        %p1809 = pneg %p1808
      $region66: #{attentionb_forward.1} parent=5 // pred_check_branch
        %1811 = sbr.rel (%p1809) target = $region68
      $region67: #{attentionb_forward.1} parent=5 // pred_region
        %s1812 = ssub.s32 %s19, 2
        // Predicated region
        $region69: #{attentionb_forward.1} parent=67 // pred_check
          %p1813 = pneg %p263
        $region70: #{attentionb_forward.1} parent=67 // pred_check_branch
          %1815 = sbr.rel (%p1813) target = $region72
        $region71: #{attentionb_forward.1} parent=67 // pred_region
          %s1816 = sand.u32 %s248, 1
          %s1817 = scalar_lea.sflag [#allocation3], %s1816
          %s1818 = sand.u32 %s248, 1
          %s1819 = smul.addr %s1818, 16
          %s1820 = scalar_lea.vmem [#allocation2], %s1819
          %1821 = dma.done %s1817, 256
        $region72: #{attentionb_forward.1} parent=67 // pred_fallthru
          _
      $region68: #{attentionb_forward.1} parent=5 // pred_fallthru
        _
    $region6: #{attentionb_forward.1} parent=1 // loop_footer
      %s23 = sadd.s32 1, %s19
    $region7: #{attentionb_forward.1} parent=1 // loop_footer_branch
      %18 = sbr.rel target = $region3
    $region8: #{attentionb_forward.1} parent=1 // loop_exit
      _
    %1822 = vsyncpa [#allocation3], 1
    %s1823 = scalar_lea.sflag [#allocation3], 1
    %1824 = vsyncpa %s1823, 1

</llo_original>
